<compile_context>
chip_gen: v7x
topology: tpu7x:2x2x1
jax: 0.10.0
libtpu: 0.0.40
codegen_flags: <defaults>
</compile_context>

<pallas_src>
import functools

import jax
import jax.numpy as jnp
from jax.experimental import pallas as pl
from jax.experimental.pallas import tpu as pltpu

IGNORE_INDEX = -100


def _fused_lce_kernel(x_ref, y_ref, w_ref, out_ref, m_ref, s_ref, t_ref):
    """Grid = (n_bt_tiles, n_vocab_tiles); vocab (axis 1) is the reduction axis."""
    j = pl.program_id(1)          # vocab tile index

    # --- init online-softmax state for this BT tile ---
    @pl.when(j == 0)
    def _():
        m_ref[...] = jnp.full_like(m_ref, -jnp.inf)   # running max
        s_ref[...] = jnp.zeros_like(s_ref)            # running sum-exp
        t_ref[...] = jnp.zeros_like(t_ref)            # target-class logit

    # --- matmul hot path: logits chunk = x_tile @ W_chunk^T (MXU, bf16 in / f32 acc) ---
    logits = jax.lax.dot_general(
        x_ref[...], w_ref[...], (((1,), (1,)), ((), ())),
        preferred_element_type=jnp.float32)           # (tb, tv) f32

    tb, tv = logits.shape
    y = y_ref[...]                                    # (tb, 1) int32

    # target logit: each label falls in exactly one vocab chunk (or none if ignored)
    local = y - j * tv                                # (tb, 1); negative => no hit
    col = jax.lax.broadcasted_iota(jnp.int32, (tb, tv), 1)
    hit = col == local
    t_ref[...] += jnp.sum(jnp.where(hit, logits, 0.0), axis=-1, keepdims=True)

    # online logsumexp update
    m_old = m_ref[...]
    m_new = jnp.maximum(m_old, jnp.max(logits, axis=-1, keepdims=True))
    s_ref[...] = (s_ref[...] * jnp.exp(m_old - m_new)
                  + jnp.sum(jnp.exp(logits - m_new), axis=-1, keepdims=True))
    m_ref[...] = m_new

    # --- finalize this BT tile after the last vocab chunk: emit per-tile partials ---
    @pl.when(j == pl.num_programs(1) - 1)
    def _():
        valid = y != IGNORE_INDEX                                    # (tb, 1) bool
        per_tok = m_ref[...] + jnp.log(s_ref[...]) - t_ref[...]      # lse - target
        per_tok = jnp.where(valid, per_tok, 0.0)
        loss_sum = jnp.sum(per_tok)
        cnt = jnp.sum(valid.astype(jnp.float32))
        lane = jax.lax.broadcasted_iota(jnp.int32, (1, out_ref.shape[1]), 1)
        out_ref[...] = jnp.where(lane == 0, loss_sum,
                                 jnp.where(lane == 1, cnt, 0.0))


def _pick_tile(n, preferred, align):
    """Largest tile <= preferred that is a multiple of `align` and divides n."""
    if n <= preferred:
        return n
    t = (preferred // align) * align
    while t >= align:
        if n % t == 0:
            return t
        t -= align
    return n        # fall back to the whole dimension (always legal)


def _vmem_limit_bytes(tb, tv, H, itemsize):
    est = (2 * (tb + tv) * H * itemsize     # double-buffered x / W tiles
           + 2 * tb * tv * 4                # f32 logits + exp temporary
           + 3 * tb * 128 * 4               # (tb,1) scratch, lane-padded
           + (4 << 20))                     # margin
    try:
        phys = pltpu.get_tpu_info().vmem_capacity_bytes
    except Exception:
        phys = 64 << 20                     # conservative (v7x per-TC)
    cap = int(phys * 3 // 4)
    return max(min(est, cap), 32 << 20)


def liger_lm_head_ce(x, y, weight, *, tb=512, tv=512):
    """x: (BT, H) bf16/f32, y: (BT,) int32, weight: (V, H). Returns scalar f32 loss."""
    BT, H = x.shape
    V, H2 = weight.shape
    assert H == H2
    tb = _pick_tile(BT, tb, 8)
    tv = _pick_tile(V, tv, 128)
    n_bt, n_v = BT // tb, V // tv
    y2 = y.reshape(BT, 1).astype(jnp.int32)
    itemsize = jnp.dtype(x.dtype).itemsize

    cost = pl.CostEstimate(
        flops=2 * BT * V * H,
        transcendentals=BT * V,
        bytes_accessed=(BT * H * itemsize
                        + n_bt * V * H * jnp.dtype(weight.dtype).itemsize
                        + BT * 4 + n_bt * 128 * 4))

    partials = pl.pallas_call(
        _fused_lce_kernel,
        out_shape=jax.ShapeDtypeStruct((n_bt, 128), jnp.float32),
        grid_spec=pltpu.PrefetchScalarGridSpec(
            num_scalar_prefetch=0,
            grid=(n_bt, n_v),
            in_specs=[
                pl.BlockSpec((tb, H), lambda i, j: (i, 0)),   # x tile
                pl.BlockSpec((tb, 1), lambda i, j: (i, 0)),   # labels tile
                pl.BlockSpec((tv, H), lambda i, j: (j, 0)),   # W vocab chunk
            ],
            out_specs=pl.BlockSpec((1, 128), lambda i, j: (i, 0)),
            scratch_shapes=[
                pltpu.VMEM((tb, 1), jnp.float32),   # running max
                pltpu.VMEM((tb, 1), jnp.float32),   # running sum-exp
                pltpu.VMEM((tb, 1), jnp.float32),   # target logit
            ],
        ),
        compiler_params=pltpu.CompilerParams(
            dimension_semantics=("parallel", "arbitrary"),
            vmem_limit_bytes=_vmem_limit_bytes(tb, tv, H, itemsize)),
        cost_estimate=cost,
    )(x, y2, weight)

    # Tiny host-side (XLA) reduction over per-tile partials -> 'mean' over valid tokens.
    return jnp.sum(partials[:, 0]) / jnp.sum(partials[:, 1])


def _reference(x, y, weight):
    logits = x.astype(jnp.float32) @ weight.astype(jnp.float32).T
    lse = jax.scipy.special.logsumexp(logits, axis=-1)
    valid = y != IGNORE_INDEX
    tgt = jnp.take_along_axis(
        logits, jnp.clip(y, 0, None)[:, None], axis=-1)[:, 0]
    per_tok = jnp.where(valid, lse - tgt, 0.0)
    return jnp.sum(per_tok) / jnp.sum(valid.astype(jnp.float32))


if __name__ == "__main__":
    # Small shapes: B=2, T=64 -> BT=128 tokens, hidden H=64, vocab V=256.
    B, T, H, V = 2, 64, 64, 256
    BT = B * T
    dtype = jnp.bfloat16

    key = jax.random.PRNGKey(0)
    k_w, k_x, k_y = jax.random.split(key, 3)

    # Deterministic init (torch.nn.Linear(H, V, bias=False).weight shape = (V, H)).
    weight = (jax.random.normal(k_w, (V, H), jnp.float32) / jnp.sqrt(H)).astype(dtype)
    x = jax.random.normal(k_x, (BT, H), jnp.float32).astype(dtype)
    y = jax.random.randint(k_y, (BT,), 0, V, dtype=jnp.int32)
    # sprinkle a few ignored labels
    y = y.at[3].set(IGNORE_INDEX).at[70].set(IGNORE_INDEX)

    ref = _reference(x, y, weight)

    # Default (large) tiles -- clamped to the small problem, single grid step.
    loss_big = jax.jit(liger_lm_head_ce)(x, y, weight)
    loss_big = jax.block_until_ready(loss_big)
    assert jnp.allclose(loss_big, ref, atol=2e-2, rtol=2e-2), (loss_big, ref)

    # Small tiles -- exercises the multi-step online reduction + per-tile partials.
    loss_small = jax.jit(functools.partial(liger_lm_head_ce, tb=64, tv=128))(x, y, weight)
    loss_small = jax.block_until_ready(loss_small)
    assert jnp.allclose(loss_small, ref, atol=2e-2, rtol=2e-2), (loss_small, ref)

    print("KERNEL_OK")
</pallas_src>

<mosaic_0001>
module attributes {stable_mosaic.version = 11 : i64} {
  func.func @_fused_lce_kernel(%arg0: i32, %arg1: i32, %arg2: memref<128x64xbf16, #tpu.memory_space<vmem>>, %arg3: memref<128x1xi32, #tpu.memory_space<vmem>>, %arg4: memref<256x64xbf16, #tpu.memory_space<vmem>>, %arg5: memref<1x128xf32, #tpu.memory_space<vmem>>, %arg6: memref<128x1xf32, #tpu.memory_space<vmem>>, %arg7: memref<128x1xf32, #tpu.memory_space<vmem>>, %arg8: memref<128x1xf32, #tpu.memory_space<vmem>>) attributes {dimension_semantics = [#tpu.dimension_semantics<parallel>, #tpu.dimension_semantics<arbitrary>], iteration_bounds = array<i64: 1, 1>, scalar_prefetch = 0 : i64, scratch_operands = 3 : i64, tpu.core_type = #tpu.core_type<tc>, window_params = [{transform_indices = @transform_0, window_bounds = array<i64: 128, 64>}, {transform_indices = @transform_1, window_bounds = array<i64: 128, 1>}, {transform_indices = @transform_2, window_bounds = array<i64: 256, 64>}, {transform_indices = @transform_3, window_bounds = array<i64: 1, 128>}]} {
    %c0_i32 = arith.constant 0 : i32
    %0 = arith.cmpi eq, %arg1, %c0_i32 : i32
    %1 = arith.extui %0 : i1 to i32
    %c0_i32_0 = arith.constant 0 : i32
    %2 = arith.cmpi ne, %1, %c0_i32_0 : i32
    scf.if %2 {
      %cst_24 = arith.constant 0xFF800000 : f32
      %39 = vector.broadcast %cst_24 : f32 to vector<128x1xf32>
      %c0_25 = arith.constant 0 : index
      %c0_26 = arith.constant 0 : index
      %40 = vector.load %arg6[%c0_25, %c0_26] : memref<128x1xf32, #tpu.memory_space<vmem>>, vector<128x1xf32>
      tpu.vector_store %arg6[%c0_25, %c0_26], %39 {strides = array<i32>} : memref<128x1xf32, #tpu.memory_space<vmem>>, vector<128x1xf32>,
      %cst_27 = arith.constant 0.000000e+00 : f32
      %41 = vector.broadcast %cst_27 : f32 to vector<128x1xf32>
      %c0_28 = arith.constant 0 : index
      %c0_29 = arith.constant 0 : index
      %42 = vector.load %arg7[%c0_28, %c0_29] : memref<128x1xf32, #tpu.memory_space<vmem>>, vector<128x1xf32>
      tpu.vector_store %arg7[%c0_28, %c0_29], %41 {strides = array<i32>} : memref<128x1xf32, #tpu.memory_space<vmem>>, vector<128x1xf32>,
      %cst_30 = arith.constant 0.000000e+00 : f32
      %43 = vector.broadcast %cst_30 : f32 to vector<128x1xf32>
      %c0_31 = arith.constant 0 : index
      %c0_32 = arith.constant 0 : index
      %44 = vector.load %arg8[%c0_31, %c0_32] : memref<128x1xf32, #tpu.memory_space<vmem>>, vector<128x1xf32>
      tpu.vector_store %arg8[%c0_31, %c0_32], %43 {strides = array<i32>} : memref<128x1xf32, #tpu.memory_space<vmem>>, vector<128x1xf32>,
    } else {
    }
    %c0 = arith.constant 0 : index
    %c0_1 = arith.constant 0 : index
    %3 = vector.load %arg2[%c0, %c0_1] : memref<128x64xbf16, #tpu.memory_space<vmem>>, vector<128x64xbf16>
    %c0_2 = arith.constant 0 : index
    %c0_3 = arith.constant 0 : index
    %4 = vector.load %arg4[%c0_2, %c0_3] : memref<256x64xbf16, #tpu.memory_space<vmem>>, vector<256x64xbf16>
    %cst = arith.constant dense<0.000000e+00> : vector<128x256xf32>
    %5 = tpu.matmul %3, %4, %cst {dimension_numbers = #tpu.dot_dimension_numbers<[1], [1], [0], [0], [0, 0, 1, 0], [], []>} : vector<128x64xbf16>, vector<256x64xbf16>, vector<128x256xf32> -> vector<128x256xf32>
    %c0_4 = arith.constant 0 : index
    %c0_5 = arith.constant 0 : index
    %6 = vector.load %arg3[%c0_4, %c0_5] : memref<128x1xi32, #tpu.memory_space<vmem>>, vector<128x1xi32>
    %c256_i32 = arith.constant 256 : i32
    %7 = arith.muli %arg1, %c256_i32 : i32
    %8 = vector.broadcast %7 : i32 to vector<128x1xi32>
    %9 = arith.subi %6, %8 : vector<128x1xi32>
    %10 = tpu.iota {dimensions = array<i32: 1>} : vector<128x256xi32>
    %11 = vector.broadcast %9 : vector<128x1xi32> to vector<128x256xi32>
    %12 = arith.cmpi eq, %10, %11 : vector<128x256xi32>
    %c0_6 = arith.constant 0 : index
    %c0_7 = arith.constant 0 : index
    %13 = vector.load %arg8[%c0_6, %c0_7] : memref<128x1xf32, #tpu.memory_space<vmem>>, vector<128x1xf32>
    %cst_8 = arith.constant 0.000000e+00 : f32
    %14 = vector.broadcast %cst_8 : f32 to vector<128x256xf32>
    %15 = arith.select %12, %5, %14 : vector<128x256xi1>, vector<128x256xf32>
    %cst_9 = arith.constant dense<0.000000e+00> : vector<128xf32>
    %16 = vector.multi_reduction <add>, %15, %cst_9 [1] : vector<128x256xf32> to vector<128xf32>
    %17 = vector.shape_cast %16 : vector<128xf32> to vector<128x1xf32>
    %18 = arith.addf %13, %17 : vector<128x1xf32>
    %c0_10 = arith.constant 0 : index
    %c0_11 = arith.constant 0 : index
    %19 = vector.load %arg8[%c0_10, %c0_11] : memref<128x1xf32, #tpu.memory_space<vmem>>, vector<128x1xf32>
    tpu.vector_store %arg8[%c0_10, %c0_11], %18 {strides = array<i32>} : memref<128x1xf32, #tpu.memory_space<vmem>>, vector<128x1xf32>,
    %c0_12 = arith.constant 0 : index
    %c0_13 = arith.constant 0 : index
    %20 = vector.load %arg6[%c0_12, %c0_13] : memref<128x1xf32, #tpu.memory_space<vmem>>, vector<128x1xf32>
    %cst_14 = arith.constant dense<0xFF800000> : vector<128xf32>
    %21 = vector.multi_reduction <maximumf>, %5, %cst_14 [1] : vector<128x256xf32> to vector<128xf32>
    %22 = vector.shape_cast %21 : vector<128xf32> to vector<128x1xf32>
    %23 = arith.maximumf %20, %22 : vector<128x1xf32>
    %c0_15 = arith.constant 0 : index
    %c0_16 = arith.constant 0 : index
    %24 = vector.load %arg7[%c0_15, %c0_16] : memref<128x1xf32, #tpu.memory_space<vmem>>, vector<128x1xf32>
    %25 = arith.subf %20, %23 : vector<128x1xf32>
    %26 = math.exp %25 : vector<128x1xf32>
    %27 = arith.mulf %24, %26 : vector<128x1xf32>
    %28 = vector.broadcast %23 : vector<128x1xf32> to vector<128x256xf32>
    %29 = arith.subf %5, %28 : vector<128x256xf32>
    %30 = math.exp %29 : vector<128x256xf32>
    %cst_17 = arith.constant dense<0.000000e+00> : vector<128xf32>
    %31 = vector.multi_reduction <add>, %30, %cst_17 [1] : vector<128x256xf32> to vector<128xf32>
    %32 = vector.shape_cast %31 : vector<128xf32> to vector<128x1xf32>
    %33 = arith.addf %27, %32 : vector<128x1xf32>
    %c0_18 = arith.constant 0 : index
    %c0_19 = arith.constant 0 : index
    %34 = vector.load %arg7[%c0_18, %c0_19] : memref<128x1xf32, #tpu.memory_space<vmem>>, vector<128x1xf32>
    tpu.vector_store %arg7[%c0_18, %c0_19], %33 {strides = array<i32>} : memref<128x1xf32, #tpu.memory_space<vmem>>, vector<128x1xf32>,
    %c0_20 = arith.constant 0 : index
    %c0_21 = arith.constant 0 : index
    %35 = vector.load %arg6[%c0_20, %c0_21] : memref<128x1xf32, #tpu.memory_space<vmem>>, vector<128x1xf32>
    tpu.vector_store %arg6[%c0_20, %c0_21], %23 {strides = array<i32>} : memref<128x1xf32, #tpu.memory_space<vmem>>, vector<128x1xf32>,
    %c0_i32_22 = arith.constant 0 : i32
    %36 = arith.cmpi eq, %arg1, %c0_i32_22 : i32
    %37 = arith.extui %36 : i1 to i32
    %c0_i32_23 = arith.constant 0 : i32
    %38 = arith.cmpi ne, %37, %c0_i32_23 : i32
    scf.if %38 {
      %c-100_i32 = arith.constant -100 : i32
      %39 = vector.broadcast %c-100_i32 : i32 to vector<128x1xi32>
      %40 = arith.cmpi ne, %6, %39 : vector<128x1xi32>
      %c0_24 = arith.constant 0 : index
      %c0_25 = arith.constant 0 : index
      %41 = vector.load %arg6[%c0_24, %c0_25] : memref<128x1xf32, #tpu.memory_space<vmem>>, vector<128x1xf32>
      %c0_26 = arith.constant 0 : index
      %c0_27 = arith.constant 0 : index
      %42 = vector.load %arg7[%c0_26, %c0_27] : memref<128x1xf32, #tpu.memory_space<vmem>>, vector<128x1xf32>
      %43 = math.log %42 : vector<128x1xf32>
      %44 = arith.addf %41, %43 : vector<128x1xf32>
      %c0_28 = arith.constant 0 : index
      %c0_29 = arith.constant 0 : index
      %45 = vector.load %arg8[%c0_28, %c0_29] : memref<128x1xf32, #tpu.memory_space<vmem>>, vector<128x1xf32>
      %46 = arith.subf %44, %45 : vector<128x1xf32>
      %cst_30 = arith.constant 0.000000e+00 : f32
      %47 = vector.broadcast %cst_30 : f32 to vector<128x1xf32>
      %48 = arith.select %40, %46, %47 : vector<128x1xi1>, vector<128x1xf32>
      %49 = vector.shape_cast %48 : vector<128x1xf32> to vector<1x128x1xf32>
      %cst_31 = arith.constant dense<0.000000e+00> : vector<1xf32>
      %50 = vector.multi_reduction <add>, %49, %cst_31 [1, 2] : vector<1x128x1xf32> to vector<1xf32>
      %51 = vector.shape_cast %50 : vector<1xf32> to vector<1x1x1xf32>
      %52 = vector.extract %51[0, 0, 0] : f32 from vector<1x1x1xf32>
      %53 = arith.extui %40 : vector<128x1xi1> to vector<128x1xi32>
      %54 = arith.sitofp %53 : vector<128x1xi32> to vector<128x1xf32>
      %55 = vector.shape_cast %54 : vector<128x1xf32> to vector<1x128x1xf32>
      %cst_32 = arith.constant dense<0.000000e+00> : vector<1xf32>
      %56 = vector.multi_reduction <add>, %55, %cst_32 [1, 2] : vector<1x128x1xf32> to vector<1xf32>
      %57 = vector.shape_cast %56 : vector<1xf32> to vector<1x1x1xf32>
      %58 = vector.extract %57[0, 0, 0] : f32 from vector<1x1x1xf32>
      %59 = tpu.iota {dimensions = array<i32: 1>} : vector<1x128xi32>
      %c0_i32_33 = arith.constant 0 : i32
      %60 = vector.broadcast %c0_i32_33 : i32 to vector<1x128xi32>
      %61 = arith.cmpi eq, %59, %60 : vector<1x128xi32>
      %c1_i32 = arith.constant 1 : i32
      %62 = vector.broadcast %c1_i32 : i32 to vector<1x128xi32>
      %63 = arith.cmpi eq, %59, %62 : vector<1x128xi32>
      %cst_34 = arith.constant 0.000000e+00 : f32
      %64 = vector.broadcast %58 : f32 to vector<1x128xf32>
      %65 = vector.broadcast %cst_34 : f32 to vector<1x128xf32>
      %66 = arith.select %63, %64, %65 : vector<1x128xi1>, vector<1x128xf32>
      %67 = vector.broadcast %52 : f32 to vector<1x128xf32>
      %68 = arith.select %61, %67, %66 : vector<1x128xi1>, vector<1x128xf32>
      %c0_35 = arith.constant 0 : index
      %c0_36 = arith.constant 0 : index
      %69 = vector.load %arg5[%c0_35, %c0_36] : memref<1x128xf32, #tpu.memory_space<vmem>>, vector<1x128xf32>
      tpu.vector_store %arg5[%c0_35, %c0_36], %68 {strides = array<i32>} : memref<1x128xf32, #tpu.memory_space<vmem>>, vector<1x128xf32>,
    } else {
    }
    return
  }
  func.func @transform_0(%arg0: i32, %arg1: i32) -> (i32, i32) {
    %c0_i32 = arith.constant 0 : i32
    %c0_i32_0 = arith.constant 0 : i32
    return %arg0, %c0_i32 : i32, i32
  }
  func.func @transform_1(%arg0: i32, %arg1: i32) -> (i32, i32) {
    %c0_i32 = arith.constant 0 : i32
    %c0_i32_0 = arith.constant 0 : i32
    return %arg0, %c0_i32 : i32, i32
  }
  func.func @transform_2(%arg0: i32, %arg1: i32) -> (i32, i32) {
    %c0_i32 = arith.constant 0 : i32
    %c0_i32_0 = arith.constant 0 : i32
    return %arg1, %c0_i32 : i32, i32
  }
  func.func @transform_3(%arg0: i32, %arg1: i32) -> (i32, i32) {
    %c0_i32 = arith.constant 0 : i32
    %c0_i32_0 = arith.constant 0 : i32
    return %arg0, %c0_i32 : i32, i32
  }
}

</mosaic_0001>

<llo_original>
// kernel: liger_lm_head_ce.1
$region0: #{liger_lm_head_ce.1}
  #allocation0 [shape = 'u32[]', space=smem, size = 0x4, offset = 0x4, fixed_abs, tag = 'smem constant byte address 0x4 - core index']
  #allocation1 [shape = 'u32[144,128]{1,0:T(1,128)}', space=vmem, size = 0x12000, scoped, tag = 'internal scratch']
  #allocation2 [shape = 'f32[128,1]{1,0:T(8,128)}', space=vmem, size = 0x10000, scoped, tag = 'scratch operand']
  #allocation3 [shape = 'f32[128,1]{1,0:T(8,128)}', space=vmem, size = 0x10000, scoped, tag = 'scratch operand']
  #allocation4 [shape = 'f32[128,1]{1,0:T(8,128)}', space=vmem, size = 0x10000, scoped, tag = 'scratch operand']
  %s0 = inlined_call_operand.vmem [shape: bf16[128,64], index: 0, kind: input, shape index: {}]
  %s1 = inlined_call_operand.vmem [shape: s32[128,1], index: 1, kind: input, shape index: {}]
  %s2 = inlined_call_operand.vmem [shape: bf16[256,64], index: 2, kind: input, shape index: {}]
  %s3 = inlined_call_operand.vmem [shape: f32[1,128], index: 3, kind: output, shape index: {}]
  %s4 = sld [smem:[#allocation0]]
  $region30: #{liger_lm_head_ce.1} parent=0
    _
  %s6 = ssub.s32 1, %s4
  %s7 = scalar_select 0, %s6, %s4
  // Predicated region
  $region2: #{liger_lm_head_ce.1} parent=0 // pred_check
    _
  $region3: #{liger_lm_head_ce.1} parent=0 // pred_check_branch
    %9 = sbr.rel (0) target = $region5
  $region4: #{liger_lm_head_ce.1} parent=0 // pred_region
    _
  $region5: #{liger_lm_head_ce.1} parent=0 // pred_fallthru
    _
  // Predicated region
  $region6: #{liger_lm_head_ce.1} parent=0 // pred_check
    _
  $region7: #{liger_lm_head_ce.1} parent=0 // pred_check_branch
    %11 = sbr.rel (0) target = $region9
  $region8: #{liger_lm_head_ce.1} parent=0 // pred_region
    _
  $region9: #{liger_lm_head_ce.1} parent=0 // pred_fallthru
    _
  // Predicated region
  $region10: #{liger_lm_head_ce.1} parent=0 // pred_check
    _
  $region11: #{liger_lm_head_ce.1} parent=0 // pred_check_branch
    %13 = sbr.rel (0) target = $region13
  $region12: #{liger_lm_head_ce.1} parent=0 // pred_region
    _
  $region13: #{liger_lm_head_ce.1} parent=0 // pred_fallthru
    _
  %p15 = scmp.eq.s32.totalorder 0, 0
  // Predicated region
  $region14: #{liger_lm_head_ce.1} parent=0 // pred_check
    %p16 = pneg %p15
  $region15: #{liger_lm_head_ce.1} parent=0 // pred_check_branch
    %18 = sbr.rel (%p16) target = $region17
  $region16: #{liger_lm_head_ce.1} parent=0 // pred_region
    %vm19 = vcmask 7168
    %20 = vst.msk [vmem:[#allocation2] sm:$0xff] %vm19, -inf
    %21 = vst.msk [vmem:[#allocation2 + $0x8] sm:$0xff] %vm19, -inf
    %22 = vst.msk [vmem:[#allocation2 + $0x10] sm:$0xff] %vm19, -inf
    %23 = vst.msk [vmem:[#allocation2 + $0x18] sm:$0xff] %vm19, -inf
    %24 = vst.msk [vmem:[#allocation2 + $0x20] sm:$0xff] %vm19, -inf
    %25 = vst.msk [vmem:[#allocation2 + $0x28] sm:$0xff] %vm19, -inf
    %26 = vst.msk [vmem:[#allocation2 + $0x30] sm:$0xff] %vm19, -inf
    %27 = vst.msk [vmem:[#allocation2 + $0x38] sm:$0xff] %vm19, -inf
    %28 = vst.msk [vmem:[#allocation2 + $0x40] sm:$0xff] %vm19, -inf
    %29 = vst.msk [vmem:[#allocation2 + $0x48] sm:$0xff] %vm19, -inf
    %30 = vst.msk [vmem:[#allocation2 + $0x50] sm:$0xff] %vm19, -inf
    %31 = vst.msk [vmem:[#allocation2 + $0x58] sm:$0xff] %vm19, -inf
    %32 = vst.msk [vmem:[#allocation2 + $0x60] sm:$0xff] %vm19, -inf
    %33 = vst.msk [vmem:[#allocation2 + $0x68] sm:$0xff] %vm19, -inf
    %34 = vst.msk [vmem:[#allocation2 + $0x70] sm:$0xff] %vm19, -inf
    %35 = vst.msk [vmem:[#allocation2 + $0x78] sm:$0xff] %vm19, -inf
    %36 = vst.msk [vmem:[#allocation3] sm:$0xff] %vm19, 0.0
    %37 = vst.msk [vmem:[#allocation3 + $0x8] sm:$0xff] %vm19, 0.0
    %38 = vst.msk [vmem:[#allocation3 + $0x10] sm:$0xff] %vm19, 0.0
    %39 = vst.msk [vmem:[#allocation3 + $0x18] sm:$0xff] %vm19, 0.0
    %40 = vst.msk [vmem:[#allocation3 + $0x20] sm:$0xff] %vm19, 0.0
    %41 = vst.msk [vmem:[#allocation3 + $0x28] sm:$0xff] %vm19, 0.0
    %42 = vst.msk [vmem:[#allocation3 + $0x30] sm:$0xff] %vm19, 0.0
    %43 = vst.msk [vmem:[#allocation3 + $0x38] sm:$0xff] %vm19, 0.0
    %44 = vst.msk [vmem:[#allocation3 + $0x40] sm:$0xff] %vm19, 0.0
    %45 = vst.msk [vmem:[#allocation3 + $0x48] sm:$0xff] %vm19, 0.0
    %46 = vst.msk [vmem:[#allocation3 + $0x50] sm:$0xff] %vm19, 0.0
    %47 = vst.msk [vmem:[#allocation3 + $0x58] sm:$0xff] %vm19, 0.0
    %48 = vst.msk [vmem:[#allocation3 + $0x60] sm:$0xff] %vm19, 0.0
    %49 = vst.msk [vmem:[#allocation3 + $0x68] sm:$0xff] %vm19, 0.0
    %50 = vst.msk [vmem:[#allocation3 + $0x70] sm:$0xff] %vm19, 0.0
    %51 = vst.msk [vmem:[#allocation3 + $0x78] sm:$0xff] %vm19, 0.0
    %52 = vst.msk [vmem:[#allocation4] sm:$0xff] %vm19, 0.0
    %53 = vst.msk [vmem:[#allocation4 + $0x8] sm:$0xff] %vm19, 0.0
    %54 = vst.msk [vmem:[#allocation4 + $0x10] sm:$0xff] %vm19, 0.0
    %55 = vst.msk [vmem:[#allocation4 + $0x18] sm:$0xff] %vm19, 0.0
    %56 = vst.msk [vmem:[#allocation4 + $0x20] sm:$0xff] %vm19, 0.0
    %57 = vst.msk [vmem:[#allocation4 + $0x28] sm:$0xff] %vm19, 0.0
    %58 = vst.msk [vmem:[#allocation4 + $0x30] sm:$0xff] %vm19, 0.0
    %59 = vst.msk [vmem:[#allocation4 + $0x38] sm:$0xff] %vm19, 0.0
    %60 = vst.msk [vmem:[#allocation4 + $0x40] sm:$0xff] %vm19, 0.0
    %61 = vst.msk [vmem:[#allocation4 + $0x48] sm:$0xff] %vm19, 0.0
    %62 = vst.msk [vmem:[#allocation4 + $0x50] sm:$0xff] %vm19, 0.0
    %63 = vst.msk [vmem:[#allocation4 + $0x58] sm:$0xff] %vm19, 0.0
    %64 = vst.msk [vmem:[#allocation4 + $0x60] sm:$0xff] %vm19, 0.0
    %65 = vst.msk [vmem:[#allocation4 + $0x68] sm:$0xff] %vm19, 0.0
    %66 = vst.msk [vmem:[#allocation4 + $0x70] sm:$0xff] %vm19, 0.0
    %67 = vst.msk [vmem:[#allocation4 + $0x78] sm:$0xff] %vm19, 0.0
  $region17: #{liger_lm_head_ce.1} parent=0 // pred_fallthru
    _
  %v68 = vld [vmem:[%s0] sm:$0xf]
  %v69 = vld [vmem:[%s0 + $0x4] sm:$0xf]
  %v70 = vld [vmem:[%s0 + $0x8] sm:$0xf]
  %v71 = vld [vmem:[%s0 + $0xc] sm:$0xf]
  %v72 = vld [vmem:[%s0 + $0x10] sm:$0xf]
  %v73 = vld [vmem:[%s0 + $0x14] sm:$0xf]
  %v74 = vld [vmem:[%s0 + $0x18] sm:$0xf]
  %v75 = vld [vmem:[%s0 + $0x1c] sm:$0xf]
  %v76 = vld [vmem:[%s0 + $0x20] sm:$0xf]
  %v77 = vld [vmem:[%s0 + $0x24] sm:$0xf]
  %v78 = vld [vmem:[%s0 + $0x28] sm:$0xf]
  %v79 = vld [vmem:[%s0 + $0x2c] sm:$0xf]
  %v80 = vld [vmem:[%s0 + $0x30] sm:$0xf]
  %v81 = vld [vmem:[%s0 + $0x34] sm:$0xf]
  %v82 = vld [vmem:[%s0 + $0x38] sm:$0xf]
  %v83 = vld [vmem:[%s0 + $0x3c] sm:$0xf]
  %v84 = vld [vmem:[%s2] sm:$0xf]
  %v85 = vld [vmem:[%s2 + $0x4] sm:$0xf]
  %v86 = vld [vmem:[%s2 + $0x8] sm:$0xf]
  %v87 = vld [vmem:[%s2 + $0xc] sm:$0xf]
  %v88 = vld [vmem:[%s2 + $0x10] sm:$0xf]
  %v89 = vld [vmem:[%s2 + $0x14] sm:$0xf]
  %v90 = vld [vmem:[%s2 + $0x18] sm:$0xf]
  %v91 = vld [vmem:[%s2 + $0x1c] sm:$0xf]
  %v92 = vld [vmem:[%s2 + $0x20] sm:$0xf]
  %v93 = vld [vmem:[%s2 + $0x24] sm:$0xf]
  %v94 = vld [vmem:[%s2 + $0x28] sm:$0xf]
  %v95 = vld [vmem:[%s2 + $0x2c] sm:$0xf]
  %v96 = vld [vmem:[%s2 + $0x30] sm:$0xf]
  %v97 = vld [vmem:[%s2 + $0x34] sm:$0xf]
  %v98 = vld [vmem:[%s2 + $0x38] sm:$0xf]
  %v99 = vld [vmem:[%s2 + $0x3c] sm:$0xf]
  %v100 = vld [vmem:[%s2 + $0x40] sm:$0xf]
  %v101 = vld [vmem:[%s2 + $0x44] sm:$0xf]
  %v102 = vld [vmem:[%s2 + $0x48] sm:$0xf]
  %v103 = vld [vmem:[%s2 + $0x4c] sm:$0xf]
  %v104 = vld [vmem:[%s2 + $0x50] sm:$0xf]
  %v105 = vld [vmem:[%s2 + $0x54] sm:$0xf]
  %v106 = vld [vmem:[%s2 + $0x58] sm:$0xf]
  %v107 = vld [vmem:[%s2 + $0x5c] sm:$0xf]
  %v108 = vld [vmem:[%s2 + $0x60] sm:$0xf]
  %v109 = vld [vmem:[%s2 + $0x64] sm:$0xf]
  %v110 = vld [vmem:[%s2 + $0x68] sm:$0xf]
  %v111 = vld [vmem:[%s2 + $0x6c] sm:$0xf]
  %v112 = vld [vmem:[%s2 + $0x70] sm:$0xf]
  %v113 = vld [vmem:[%s2 + $0x74] sm:$0xf]
  %v114 = vld [vmem:[%s2 + $0x78] sm:$0xf]
  %v115 = vld [vmem:[%s2 + $0x7c] sm:$0xf]
  %v132 = vunpack.c.l.b16 %v68
  %v133 = vunpack.c.l.b16 %v69
  %v134 = vunpack.c.l.b16 %v70
  %v135 = vunpack.c.l.b16 %v71
  %v136 = vunpack.c.l.b16 %v72
  %v137 = vunpack.c.l.b16 %v73
  %v138 = vunpack.c.l.b16 %v74
  %v139 = vunpack.c.l.b16 %v75
  %v140 = vunpack.c.l.b16 %v76
  %v141 = vunpack.c.l.b16 %v77
  %v142 = vunpack.c.l.b16 %v78
  %v143 = vunpack.c.l.b16 %v79
  %v144 = vunpack.c.l.b16 %v80
  %v145 = vunpack.c.l.b16 %v81
  %v146 = vunpack.c.l.b16 %v82
  %v147 = vunpack.c.l.b16 %v83
  %v148 = vpack.c.b16 %v133, %v132
  %v149 = vpack.c.b16 %v135, %v134
  %v150 = vpack.c.b16 %v137, %v136
  %v151 = vpack.c.b16 %v139, %v138
  %v152 = vpack.c.b16 %v141, %v140
  %v153 = vpack.c.b16 %v143, %v142
  %v154 = vpack.c.b16 %v145, %v144
  %v155 = vpack.c.b16 %v147, %v146
  %v188 = vunpack.c.l.b16 %v84
  %v189 = vunpack.c.l.b16 %v85
  %v190 = vunpack.c.l.b16 %v86
  %v191 = vunpack.c.l.b16 %v87
  %v192 = vunpack.c.l.b16 %v88
  %v193 = vunpack.c.l.b16 %v89
  %v194 = vunpack.c.l.b16 %v90
  %v195 = vunpack.c.l.b16 %v91
  %v196 = vunpack.c.l.b16 %v92
  %v197 = vunpack.c.l.b16 %v93
  %v198 = vunpack.c.l.b16 %v94
  %v199 = vunpack.c.l.b16 %v95
  %v200 = vunpack.c.l.b16 %v96
  %v201 = vunpack.c.l.b16 %v97
  %v202 = vunpack.c.l.b16 %v98
  %v203 = vunpack.c.l.b16 %v99
  %v204 = vunpack.c.l.b16 %v100
  %v205 = vunpack.c.l.b16 %v101
  %v206 = vunpack.c.l.b16 %v102
  %v207 = vunpack.c.l.b16 %v103
  %v208 = vunpack.c.l.b16 %v104
  %v209 = vunpack.c.l.b16 %v105
  %v210 = vunpack.c.l.b16 %v106
  %v211 = vunpack.c.l.b16 %v107
  %v212 = vunpack.c.l.b16 %v108
  %v213 = vunpack.c.l.b16 %v109
  %v214 = vunpack.c.l.b16 %v110
  %v215 = vunpack.c.l.b16 %v111
  %v216 = vunpack.c.l.b16 %v112
  %v217 = vunpack.c.l.b16 %v113
  %v218 = vunpack.c.l.b16 %v114
  %v219 = vunpack.c.l.b16 %v115
  %v220 = vpack.c.b16 %v189, %v188
  %v221 = vpack.c.b16 %v191, %v190
  %v222 = vpack.c.b16 %v193, %v192
  %v223 = vpack.c.b16 %v195, %v194
  %v224 = vpack.c.b16 %v197, %v196
  %v225 = vpack.c.b16 %v199, %v198
  %v226 = vpack.c.b16 %v201, %v200
  %v227 = vpack.c.b16 %v203, %v202
  %v228 = vpack.c.b16 %v205, %v204
  %v229 = vpack.c.b16 %v207, %v206
  %v230 = vpack.c.b16 %v209, %v208
  %v231 = vpack.c.b16 %v211, %v210
  %v232 = vpack.c.b16 %v213, %v212
  %v233 = vpack.c.b16 %v215, %v214
  %v234 = vpack.c.b16 %v217, %v216
  %v235 = vpack.c.b16 %v219, %v218
  %vm236 = vcmask 523264
  %v238 = vsel %vm236, %v148, 0
  %v241 = vsel %vm236, %v149, 0
  %v244 = vsel %vm236, %v150, 0
  %v247 = vsel %vm236, %v151, 0
  %v250 = vsel %vm236, %v152, 0
  %v253 = vsel %vm236, %v153, 0
  %v256 = vsel %vm236, %v154, 0
  %v259 = vsel %vm236, %v155, 0
  %v262 = vsel %vm236, %v220, 0
  %v265 = vsel %vm236, %v221, 0
  %v268 = vsel %vm236, %v222, 0
  %v271 = vsel %vm236, %v223, 0
  %v274 = vsel %vm236, %v224, 0
  %v277 = vsel %vm236, %v225, 0
  %v280 = vsel %vm236, %v226, 0
  %v283 = vsel %vm236, %v227, 0
  %v286 = vsel %vm236, %v228, 0
  %v289 = vsel %vm236, %v229, 0
  %v292 = vsel %vm236, %v230, 0
  %v295 = vsel %vm236, %v231, 0
  %v298 = vsel %vm236, %v232, 0
  %v301 = vsel %vm236, %v233, 0
  %v304 = vsel %vm236, %v234, 0
  %v307 = vsel %vm236, %v235, 0
  %309 = vmatprep.subr.bf16.mxu0 0
  %310 = vmatpush1.bf16.xpose.msra.mxu0 %v262
  %311 = vmatprep.subr.bf16.mxu0 0
  %312 = vmatpush1.bf16.xpose.msra.mxu0 %v265
  %313 = vmatprep.subr.bf16.mxu0 0
  %314 = vmatpush1.bf16.xpose.msra.mxu0 %v268
  %315 = vmatprep.subr.bf16.mxu0 0
  %316 = vmatpush1.bf16.xpose.msra.mxu0 %v271
  %317 = vmatprep.subr.bf16.mxu0 0
  %318 = vmatpush1.bf16.xpose.msra.mxu0 %v274
  %319 = vmatprep.subr.bf16.mxu0 0
  %320 = vmatpush1.bf16.xpose.msra.mxu0 %v277
  %321 = vmatprep.subr.bf16.mxu0 0
  %322 = vmatpush1.bf16.xpose.msra.mxu0 %v280
  %323 = vmatprep.subr.bf16.mxu0 0
  %324 = vmatpush1.bf16.xpose.msra.mxu0 %v283
  %325 = vmatprep.subr.bf16.mxu0 0
  %326 = vmatpush1.bf16.xpose.msra.mxu0 %v286
  %327 = vmatprep.subr.bf16.mxu0 0
  %328 = vmatpush1.bf16.xpose.msra.mxu0 %v289
  %329 = vmatprep.subr.bf16.mxu0 0
  %330 = vmatpush1.bf16.xpose.msra.mxu0 %v292
  %331 = vmatprep.subr.bf16.mxu0 0
  %332 = vmatpush1.bf16.xpose.msra.mxu0 %v295
  %333 = vmatprep.subr.bf16.mxu0 0
  %334 = vmatpush1.bf16.xpose.msra.mxu0 %v298
  %335 = vmatprep.subr.bf16.mxu0 0
  %336 = vmatpush1.bf16.xpose.msra.mxu0 %v301
  %337 = vmatprep.subr.bf16.mxu0 0
  %338 = vmatpush1.bf16.xpose.msra.mxu0 %v304
  %339 = vmatprep.subr.bf16.mxu0 0
  %340 = vmatpush1.bf16.xpose.msra.mxu0 %v307
  %341 = vmatprep.mubr.bf16.mxu0 0
  %342 = vmatmul.mubr.bf16.gmra.mrb[0].mxu0 %v238
  %v343 = vpop.f32.mrb[0].mxu0
  %v344 = vadd.f32 0.0, %v343
  %v345 = vpop.f32.mrb[0].mxu0
  %v346 = vadd.f32 0.0, %v345
  %v347 = vpop.f32.mrb[0].mxu0
  %v348 = vadd.f32 0.0, %v347
  %v349 = vpop.f32.mrb[0].mxu0
  %v350 = vadd.f32 0.0, %v349
  %351 = vmatprep.mubr.bf16.mxu0 0
  %352 = vmatmul.mubr.bf16.gmra.mrb[0].mxu0 %v241
  %v353 = vpop.f32.mrb[0].mxu0
  %v354 = vadd.f32 0.0, %v353
  %v355 = vpop.f32.mrb[0].mxu0
  %v356 = vadd.f32 0.0, %v355
  %v357 = vpop.f32.mrb[0].mxu0
  %v358 = vadd.f32 0.0, %v357
  %v359 = vpop.f32.mrb[0].mxu0
  %v360 = vadd.f32 0.0, %v359
  %361 = vmatprep.mubr.bf16.mxu0 0
  %362 = vmatmul.mubr.bf16.gmra.mrb[0].mxu0 %v244
  %v363 = vpop.f32.mrb[0].mxu0
  %v364 = vadd.f32 0.0, %v363
  %v365 = vpop.f32.mrb[0].mxu0
  %v366 = vadd.f32 0.0, %v365
  %v367 = vpop.f32.mrb[0].mxu0
  %v368 = vadd.f32 0.0, %v367
  %v369 = vpop.f32.mrb[0].mxu0
  %v370 = vadd.f32 0.0, %v369
  %371 = vmatprep.mubr.bf16.mxu0 0
  %372 = vmatmul.mubr.bf16.gmra.mrb[0].mxu0 %v247
  %v373 = vpop.f32.mrb[0].mxu0
  %v374 = vadd.f32 0.0, %v373
  %v375 = vpop.f32.mrb[0].mxu0
  %v376 = vadd.f32 0.0, %v375
  %v377 = vpop.f32.mrb[0].mxu0
  %v378 = vadd.f32 0.0, %v377
  %v379 = vpop.f32.mrb[0].mxu0
  %v380 = vadd.f32 0.0, %v379
  %381 = vmatprep.mubr.bf16.mxu0 0
  %382 = vmatmul.mubr.bf16.gmra.mrb[0].mxu0 %v250
  %v383 = vpop.f32.mrb[0].mxu0
  %v384 = vadd.f32 0.0, %v383
  %v385 = vpop.f32.mrb[0].mxu0
  %v386 = vadd.f32 0.0, %v385
  %v387 = vpop.f32.mrb[0].mxu0
  %v388 = vadd.f32 0.0, %v387
  %v389 = vpop.f32.mrb[0].mxu0
  %v390 = vadd.f32 0.0, %v389
  %391 = vmatprep.mubr.bf16.mxu0 0
  %392 = vmatmul.mubr.bf16.gmra.mrb[0].mxu0 %v253
  %v393 = vpop.f32.mrb[0].mxu0
  %v394 = vadd.f32 0.0, %v393
  %v395 = vpop.f32.mrb[0].mxu0
  %v396 = vadd.f32 0.0, %v395
  %v397 = vpop.f32.mrb[0].mxu0
  %v398 = vadd.f32 0.0, %v397
  %v399 = vpop.f32.mrb[0].mxu0
  %v400 = vadd.f32 0.0, %v399
  %401 = vmatprep.mubr.bf16.mxu0 0
  %402 = vmatmul.mubr.bf16.gmra.mrb[0].mxu0 %v256
  %v403 = vpop.f32.mrb[0].mxu0
  %v404 = vadd.f32 0.0, %v403
  %v405 = vpop.f32.mrb[0].mxu0
  %v406 = vadd.f32 0.0, %v405
  %v407 = vpop.f32.mrb[0].mxu0
  %v408 = vadd.f32 0.0, %v407
  %v409 = vpop.f32.mrb[0].mxu0
  %v410 = vadd.f32 0.0, %v409
  %411 = vmatprep.mubr.bf16.mxu0 0
  %412 = vmatmul.mubr.bf16.gmra.mrb[0].mxu0 %v259
  %v413 = vpop.f32.mrb[0].mxu0
  %v414 = vadd.f32 0.0, %v413
  %v415 = vpop.f32.mrb[0].mxu0
  %v416 = vadd.f32 0.0, %v415
  %v417 = vpop.f32.mrb[0].mxu0
  %v418 = vadd.f32 0.0, %v417
  %v419 = vpop.f32.mrb[0].mxu0
  %v420 = vadd.f32 0.0, %v419
  %421 = vdwg.mxu0
  %v422 = vld [vmem:[%s1] sm:$0xff]
  %v423 = vld [vmem:[%s1 + $0x8] sm:$0xff]
  %v424 = vld [vmem:[%s1 + $0x10] sm:$0xff]
  %v425 = vld [vmem:[%s1 + $0x18] sm:$0xff]
  %v426 = vld [vmem:[%s1 + $0x20] sm:$0xff]
  %v427 = vld [vmem:[%s1 + $0x28] sm:$0xff]
  %v428 = vld [vmem:[%s1 + $0x30] sm:$0xff]
  %v429 = vld [vmem:[%s1 + $0x38] sm:$0xff]
  %v430 = vld [vmem:[%s1 + $0x40] sm:$0xff]
  %v431 = vld [vmem:[%s1 + $0x48] sm:$0xff]
  %v432 = vld [vmem:[%s1 + $0x50] sm:$0xff]
  %v433 = vld [vmem:[%s1 + $0x58] sm:$0xff]
  %v434 = vld [vmem:[%s1 + $0x60] sm:$0xff]
  %v435 = vld [vmem:[%s1 + $0x68] sm:$0xff]
  %v436 = vld [vmem:[%s1 + $0x70] sm:$0xff]
  %v437 = vld [vmem:[%s1 + $0x78] sm:$0xff]
  %s438 = smul.u32 0, 256
  %v439 = vstv %s438
  %v440 = vsub.s32 %v422, %v439
  %v441 = vsub.s32 %v423, %v439
  %v442 = vsub.s32 %v424, %v439
  %v443 = vsub.s32 %v425, %v439
  %v444 = vsub.s32 %v426, %v439
  %v445 = vsub.s32 %v427, %v439
  %v446 = vsub.s32 %v428, %v439
  %v447 = vsub.s32 %v429, %v439
  %v448 = vsub.s32 %v430, %v439
  %v449 = vsub.s32 %v431, %v439
  %v450 = vsub.s32 %v432, %v439
  %v451 = vsub.s32 %v433, %v439
  %v452 = vsub.s32 %v434, %v439
  %v453 = vsub.s32 %v435, %v439
  %v454 = vsub.s32 %v436, %v439
  %v455 = vsub.s32 %v437, %v439
  %v456 = vlaneseq
  %v457 = vand.u32 %v456, 127
  %v458 = vadd.s32 %v457, 128
  %459 = vset.pattern.permute.xlu0 0
  %460 = vperm.xlu0 %459, %v440
  %v461 = vpop.permute.xlu0 %460
  %462 = vset.pattern.permute.xlu0 0
  %463 = vperm.xlu0 %462, %v441
  %v464 = vpop.permute.xlu0 %463
  %465 = vset.pattern.permute.xlu0 0
  %466 = vperm.xlu0 %465, %v442
  %v467 = vpop.permute.xlu0 %466
  %468 = vset.pattern.permute.xlu0 0
  %469 = vperm.xlu0 %468, %v443
  %v470 = vpop.permute.xlu0 %469
  %471 = vset.pattern.permute.xlu0 0
  %472 = vperm.xlu0 %471, %v444
  %v473 = vpop.permute.xlu0 %472
  %474 = vset.pattern.permute.xlu0 0
  %475 = vperm.xlu0 %474, %v445
  %v476 = vpop.permute.xlu0 %475
  %477 = vset.pattern.permute.xlu0 0
  %478 = vperm.xlu0 %477, %v446
  %v479 = vpop.permute.xlu0 %478
  %480 = vset.pattern.permute.xlu0 0
  %481 = vperm.xlu0 %480, %v447
  %v482 = vpop.permute.xlu0 %481
  %483 = vset.pattern.permute.xlu0 0
  %484 = vperm.xlu0 %483, %v448
  %v485 = vpop.permute.xlu0 %484
  %486 = vset.pattern.permute.xlu0 0
  %487 = vperm.xlu0 %486, %v449
  %v488 = vpop.permute.xlu0 %487
  %489 = vset.pattern.permute.xlu0 0
  %490 = vperm.xlu0 %489, %v450
  %v491 = vpop.permute.xlu0 %490
  %492 = vset.pattern.permute.xlu0 0
  %493 = vperm.xlu0 %492, %v451
  %v494 = vpop.permute.xlu0 %493
  %495 = vset.pattern.permute.xlu0 0
  %496 = vperm.xlu0 %495, %v452
  %v497 = vpop.permute.xlu0 %496
  %498 = vset.pattern.permute.xlu0 0
  %499 = vperm.xlu0 %498, %v453
  %v500 = vpop.permute.xlu0 %499
  %501 = vset.pattern.permute.xlu0 0
  %502 = vperm.xlu0 %501, %v454
  %v503 = vpop.permute.xlu0 %502
  %504 = vset.pattern.permute.xlu0 0
  %505 = vperm.xlu0 %504, %v455
  %v506 = vpop.permute.xlu0 %505
  %vm507 = vcmp.eq.s32.totalorder %v457, %v461
  %vm508 = vcmp.eq.s32.totalorder %v458, %v461
  %vm509 = vcmp.eq.s32.totalorder %v457, %v464
  %vm510 = vcmp.eq.s32.totalorder %v458, %v464
  %vm511 = vcmp.eq.s32.totalorder %v457, %v467
  %vm512 = vcmp.eq.s32.totalorder %v458, %v467
  %vm513 = vcmp.eq.s32.totalorder %v457, %v470
  %vm514 = vcmp.eq.s32.totalorder %v458, %v470
  %vm515 = vcmp.eq.s32.totalorder %v457, %v473
  %vm516 = vcmp.eq.s32.totalorder %v458, %v473
  %vm517 = vcmp.eq.s32.totalorder %v457, %v476
  %vm518 = vcmp.eq.s32.totalorder %v458, %v476
  %vm519 = vcmp.eq.s32.totalorder %v457, %v479
  %vm520 = vcmp.eq.s32.totalorder %v458, %v479
  %vm521 = vcmp.eq.s32.totalorder %v457, %v482
  %vm522 = vcmp.eq.s32.totalorder %v458, %v482
  %vm523 = vcmp.eq.s32.totalorder %v457, %v485
  %vm524 = vcmp.eq.s32.totalorder %v458, %v485
  %vm525 = vcmp.eq.s32.totalorder %v457, %v488
  %vm526 = vcmp.eq.s32.totalorder %v458, %v488
  %vm527 = vcmp.eq.s32.totalorder %v457, %v491
  %vm528 = vcmp.eq.s32.totalorder %v458, %v491
  %vm529 = vcmp.eq.s32.totalorder %v457, %v494
  %vm530 = vcmp.eq.s32.totalorder %v458, %v494
  %vm531 = vcmp.eq.s32.totalorder %v457, %v497
  %vm532 = vcmp.eq.s32.totalorder %v458, %v497
  %vm533 = vcmp.eq.s32.totalorder %v457, %v500
  %vm534 = vcmp.eq.s32.totalorder %v458, %v500
  %vm535 = vcmp.eq.s32.totalorder %v457, %v503
  %vm536 = vcmp.eq.s32.totalorder %v458, %v503
  %vm537 = vcmp.eq.s32.totalorder %v457, %v506
  %vm538 = vcmp.eq.s32.totalorder %v458, %v506
  %v539 = vld [vmem:[#allocation4] sm:$0xff]
  %v540 = vld [vmem:[#allocation4 + $0x8] sm:$0xff]
  %v541 = vld [vmem:[#allocation4 + $0x10] sm:$0xff]
  %v542 = vld [vmem:[#allocation4 + $0x18] sm:$0xff]
  %v543 = vld [vmem:[#allocation4 + $0x20] sm:$0xff]
  %v544 = vld [vmem:[#allocation4 + $0x28] sm:$0xff]
  %v545 = vld [vmem:[#allocation4 + $0x30] sm:$0xff]
  %v546 = vld [vmem:[#allocation4 + $0x38] sm:$0xff]
  %v547 = vld [vmem:[#allocation4 + $0x40] sm:$0xff]
  %v548 = vld [vmem:[#allocation4 + $0x48] sm:$0xff]
  %v549 = vld [vmem:[#allocation4 + $0x50] sm:$0xff]
  %v550 = vld [vmem:[#allocation4 + $0x58] sm:$0xff]
  %v551 = vld [vmem:[#allocation4 + $0x60] sm:$0xff]
  %v552 = vld [vmem:[#allocation4 + $0x68] sm:$0xff]
  %v553 = vld [vmem:[#allocation4 + $0x70] sm:$0xff]
  %v554 = vld [vmem:[#allocation4 + $0x78] sm:$0xff]
  %v555 = vsel %vm507, %v344, 0.0
  %v556 = vsel %vm508, %v346, 0.0
  %v557 = vsel %vm509, %v348, 0.0
  %v558 = vsel %vm510, %v350, 0.0
  %v559 = vsel %vm511, %v354, 0.0
  %v560 = vsel %vm512, %v356, 0.0
  %v561 = vsel %vm513, %v358, 0.0
  %v562 = vsel %vm514, %v360, 0.0
  %v563 = vsel %vm515, %v364, 0.0
  %v564 = vsel %vm516, %v366, 0.0
  %v565 = vsel %vm517, %v368, 0.0
  %v566 = vsel %vm518, %v370, 0.0
  %v567 = vsel %vm519, %v374, 0.0
  %v568 = vsel %vm520, %v376, 0.0
  %v569 = vsel %vm521, %v378, 0.0
  %v570 = vsel %vm522, %v380, 0.0
  %v571 = vsel %vm523, %v384, 0.0
  %v572 = vsel %vm524, %v386, 0.0
  %v573 = vsel %vm525, %v388, 0.0
  %v574 = vsel %vm526, %v390, 0.0
  %v575 = vsel %vm527, %v394, 0.0
  %v576 = vsel %vm528, %v396, 0.0
  %v577 = vsel %vm529, %v398, 0.0
  %v578 = vsel %vm530, %v400, 0.0
  %v579 = vsel %vm531, %v404, 0.0
  %v580 = vsel %vm532, %v406, 0.0
  %v581 = vsel %vm533, %v408, 0.0
  %v582 = vsel %vm534, %v410, 0.0
  %v583 = vsel %vm535, %v414, 0.0
  %v584 = vsel %vm536, %v416, 0.0
  %v585 = vsel %vm537, %v418, 0.0
  %v586 = vsel %vm538, %v420, 0.0
  %v587 = vadd.f32 %v555, %v556
  %588 = vadd.xlane.f32.xlu0 %v587
  %v589 = vpop.xlane.xlu0 %588
  %v590 = vadd.f32 %v557, %v558
  %591 = vadd.xlane.f32.xlu0 %v590
  %v592 = vpop.xlane.xlu0 %591
  %v593 = vadd.f32 %v559, %v560
  %594 = vadd.xlane.f32.xlu0 %v593
  %v595 = vpop.xlane.xlu0 %594
  %v596 = vadd.f32 %v561, %v562
  %597 = vadd.xlane.f32.xlu0 %v596
  %v598 = vpop.xlane.xlu0 %597
  %v599 = vadd.f32 %v563, %v564
  %600 = vadd.xlane.f32.xlu0 %v599
  %v601 = vpop.xlane.xlu0 %600
  %v602 = vadd.f32 %v565, %v566
  %603 = vadd.xlane.f32.xlu0 %v602
  %v604 = vpop.xlane.xlu0 %603
  %v605 = vadd.f32 %v567, %v568
  %606 = vadd.xlane.f32.xlu0 %v605
  %v607 = vpop.xlane.xlu0 %606
  %v608 = vadd.f32 %v569, %v570
  %609 = vadd.xlane.f32.xlu0 %v608
  %v610 = vpop.xlane.xlu0 %609
  %v611 = vadd.f32 %v571, %v572
  %612 = vadd.xlane.f32.xlu0 %v611
  %v613 = vpop.xlane.xlu0 %612
  %v614 = vadd.f32 %v573, %v574
  %615 = vadd.xlane.f32.xlu0 %v614
  %v616 = vpop.xlane.xlu0 %615
  %v617 = vadd.f32 %v575, %v576
  %618 = vadd.xlane.f32.xlu0 %v617
  %v619 = vpop.xlane.xlu0 %618
  %v620 = vadd.f32 %v577, %v578
  %621 = vadd.xlane.f32.xlu0 %v620
  %v622 = vpop.xlane.xlu0 %621
  %v623 = vadd.f32 %v579, %v580
  %624 = vadd.xlane.f32.xlu0 %v623
  %v625 = vpop.xlane.xlu0 %624
  %v626 = vadd.f32 %v581, %v582
  %627 = vadd.xlane.f32.xlu0 %v626
  %v628 = vpop.xlane.xlu0 %627
  %v629 = vadd.f32 %v583, %v584
  %630 = vadd.xlane.f32.xlu0 %v629
  %v631 = vpop.xlane.xlu0 %630
  %v632 = vadd.f32 %v585, %v586
  %633 = vadd.xlane.f32.xlu0 %v632
  %v634 = vpop.xlane.xlu0 %633
  %v635 = vadd.f32 %v539, %v589
  %v636 = vadd.f32 %v540, %v592
  %v637 = vadd.f32 %v541, %v595
  %v638 = vadd.f32 %v542, %v598
  %v639 = vadd.f32 %v543, %v601
  %v640 = vadd.f32 %v544, %v604
  %v641 = vadd.f32 %v545, %v607
  %v642 = vadd.f32 %v546, %v610
  %v643 = vadd.f32 %v547, %v613
  %v644 = vadd.f32 %v548, %v616
  %v645 = vadd.f32 %v549, %v619
  %v646 = vadd.f32 %v550, %v622
  %v647 = vadd.f32 %v551, %v625
  %v648 = vadd.f32 %v552, %v628
  %v649 = vadd.f32 %v553, %v631
  %v650 = vadd.f32 %v554, %v634
  %vm651 = vcmask 7168
  %652 = vst.msk [vmem:[#allocation4] sm:$0xff] %vm651, %v635
  %653 = vst.msk [vmem:[#allocation4 + $0x8] sm:$0xff] %vm651, %v636
  %654 = vst.msk [vmem:[#allocation4 + $0x10] sm:$0xff] %vm651, %v637
  %655 = vst.msk [vmem:[#allocation4 + $0x18] sm:$0xff] %vm651, %v638
  %656 = vst.msk [vmem:[#allocation4 + $0x20] sm:$0xff] %vm651, %v639
  %657 = vst.msk [vmem:[#allocation4 + $0x28] sm:$0xff] %vm651, %v640
  %658 = vst.msk [vmem:[#allocation4 + $0x30] sm:$0xff] %vm651, %v641
  %659 = vst.msk [vmem:[#allocation4 + $0x38] sm:$0xff] %vm651, %v642
  %660 = vst.msk [vmem:[#allocation4 + $0x40] sm:$0xff] %vm651, %v643
  %661 = vst.msk [vmem:[#allocation4 + $0x48] sm:$0xff] %vm651, %v644
  %662 = vst.msk [vmem:[#allocation4 + $0x50] sm:$0xff] %vm651, %v645
  %663 = vst.msk [vmem:[#allocation4 + $0x58] sm:$0xff] %vm651, %v646
  %664 = vst.msk [vmem:[#allocation4 + $0x60] sm:$0xff] %vm651, %v647
  %665 = vst.msk [vmem:[#allocation4 + $0x68] sm:$0xff] %vm651, %v648
  %666 = vst.msk [vmem:[#allocation4 + $0x70] sm:$0xff] %vm651, %v649
  %667 = vst.msk [vmem:[#allocation4 + $0x78] sm:$0xff] %vm651, %v650
  %v668 = vld [vmem:[#allocation2] sm:$0xff]
  %v669 = vld [vmem:[#allocation2 + $0x8] sm:$0xff]
  %v670 = vld [vmem:[#allocation2 + $0x10] sm:$0xff]
  %v671 = vld [vmem:[#allocation2 + $0x18] sm:$0xff]
  %v672 = vld [vmem:[#allocation2 + $0x20] sm:$0xff]
  %v673 = vld [vmem:[#allocation2 + $0x28] sm:$0xff]
  %v674 = vld [vmem:[#allocation2 + $0x30] sm:$0xff]
  %v675 = vld [vmem:[#allocation2 + $0x38] sm:$0xff]
  %v676 = vld [vmem:[#allocation2 + $0x40] sm:$0xff]
  %v677 = vld [vmem:[#allocation2 + $0x48] sm:$0xff]
  %v678 = vld [vmem:[#allocation2 + $0x50] sm:$0xff]
  %v679 = vld [vmem:[#allocation2 + $0x58] sm:$0xff]
  %v680 = vld [vmem:[#allocation2 + $0x60] sm:$0xff]
  %v681 = vld [vmem:[#allocation2 + $0x68] sm:$0xff]
  %v682 = vld [vmem:[#allocation2 + $0x70] sm:$0xff]
  %v683 = vld [vmem:[#allocation2 + $0x78] sm:$0xff]
  %v684 = vmax.f32 %v344, %v346
  %685 = vmax.xlane.f32.xlu0 %v684
  %v686 = vpop.xlane.xlu0 %685
  %v687 = vmax.f32 %v348, %v350
  %688 = vmax.xlane.f32.xlu0 %v687
  %v689 = vpop.xlane.xlu0 %688
  %v690 = vmax.f32 %v354, %v356
  %691 = vmax.xlane.f32.xlu0 %v690
  %v692 = vpop.xlane.xlu0 %691
  %v693 = vmax.f32 %v358, %v360
  %694 = vmax.xlane.f32.xlu0 %v693
  %v695 = vpop.xlane.xlu0 %694
  %v696 = vmax.f32 %v364, %v366
  %697 = vmax.xlane.f32.xlu0 %v696
  %v698 = vpop.xlane.xlu0 %697
  %v699 = vmax.f32 %v368, %v370
  %700 = vmax.xlane.f32.xlu0 %v699
  %v701 = vpop.xlane.xlu0 %700
  %v702 = vmax.f32 %v374, %v376
  %703 = vmax.xlane.f32.xlu0 %v702
  %v704 = vpop.xlane.xlu0 %703
  %v705 = vmax.f32 %v378, %v380
  %706 = vmax.xlane.f32.xlu0 %v705
  %v707 = vpop.xlane.xlu0 %706
  %v708 = vmax.f32 %v384, %v386
  %709 = vmax.xlane.f32.xlu0 %v708
  %v710 = vpop.xlane.xlu0 %709
  %v711 = vmax.f32 %v388, %v390
  %712 = vmax.xlane.f32.xlu0 %v711
  %v713 = vpop.xlane.xlu0 %712
  %v714 = vmax.f32 %v394, %v396
  %715 = vmax.xlane.f32.xlu0 %v714
  %v716 = vpop.xlane.xlu0 %715
  %v717 = vmax.f32 %v398, %v400
  %718 = vmax.xlane.f32.xlu0 %v717
  %v719 = vpop.xlane.xlu0 %718
  %v720 = vmax.f32 %v404, %v406
  %721 = vmax.xlane.f32.xlu0 %v720
  %v722 = vpop.xlane.xlu0 %721
  %v723 = vmax.f32 %v408, %v410
  %724 = vmax.xlane.f32.xlu0 %v723
  %v725 = vpop.xlane.xlu0 %724
  %v726 = vmax.f32 %v414, %v416
  %727 = vmax.xlane.f32.xlu0 %v726
  %v728 = vpop.xlane.xlu0 %727
  %v729 = vmax.f32 %v418, %v420
  %730 = vmax.xlane.f32.xlu0 %v729
  %v731 = vpop.xlane.xlu0 %730
  %v732 = vmax.f32 %v668, %v686
  %v733 = vmax.f32 %v669, %v689
  %v734 = vmax.f32 %v670, %v692
  %v735 = vmax.f32 %v671, %v695
  %v736 = vmax.f32 %v672, %v698
  %v737 = vmax.f32 %v673, %v701
  %v738 = vmax.f32 %v674, %v704
  %v739 = vmax.f32 %v675, %v707
  %v740 = vmax.f32 %v676, %v710
  %v741 = vmax.f32 %v677, %v713
  %v742 = vmax.f32 %v678, %v716
  %v743 = vmax.f32 %v679, %v719
  %v744 = vmax.f32 %v680, %v722
  %v745 = vmax.f32 %v681, %v725
  %v746 = vmax.f32 %v682, %v728
  %v747 = vmax.f32 %v683, %v731
  %v748 = vld [vmem:[#allocation3] sm:$0xff]
  %v749 = vld [vmem:[#allocation3 + $0x8] sm:$0xff]
  %v750 = vld [vmem:[#allocation3 + $0x10] sm:$0xff]
  %v751 = vld [vmem:[#allocation3 + $0x18] sm:$0xff]
  %v752 = vld [vmem:[#allocation3 + $0x20] sm:$0xff]
  %v753 = vld [vmem:[#allocation3 + $0x28] sm:$0xff]
  %v754 = vld [vmem:[#allocation3 + $0x30] sm:$0xff]
  %v755 = vld [vmem:[#allocation3 + $0x38] sm:$0xff]
  %v756 = vld [vmem:[#allocation3 + $0x40] sm:$0xff]
  %v757 = vld [vmem:[#allocation3 + $0x48] sm:$0xff]
  %v758 = vld [vmem:[#allocation3 + $0x50] sm:$0xff]
  %v759 = vld [vmem:[#allocation3 + $0x58] sm:$0xff]
  %v760 = vld [vmem:[#allocation3 + $0x60] sm:$0xff]
  %v761 = vld [vmem:[#allocation3 + $0x68] sm:$0xff]
  %v762 = vld [vmem:[#allocation3 + $0x70] sm:$0xff]
  %v763 = vld [vmem:[#allocation3 + $0x78] sm:$0xff]
  %v764 = vsub.f32 %v668, %v732
  %v765 = vsub.f32 %v669, %v733
  %v766 = vsub.f32 %v670, %v734
  %v767 = vsub.f32 %v671, %v735
  %v768 = vsub.f32 %v672, %v736
  %v769 = vsub.f32 %v673, %v737
  %v770 = vsub.f32 %v674, %v738
  %v771 = vsub.f32 %v675, %v739
  %v772 = vsub.f32 %v676, %v740
  %v773 = vsub.f32 %v677, %v741
  %v774 = vsub.f32 %v678, %v742
  %v775 = vsub.f32 %v679, %v743
  %v776 = vsub.f32 %v680, %v744
  %v777 = vsub.f32 %v681, %v745
  %v778 = vsub.f32 %v682, %v746
  %v779 = vsub.f32 %v683, %v747
  %v780 = vmul.f32 %v764, 1.442695
  %v781 = vpow.pop %v780
  %v782 = vmul.f32 %v765, 1.442695
  %v783 = vpow.pop %v782
  %v784 = vmul.f32 %v766, 1.442695
  %v785 = vpow.pop %v784
  %v786 = vmul.f32 %v767, 1.442695
  %v787 = vpow.pop %v786
  %v788 = vmul.f32 %v768, 1.442695
  %v789 = vpow.pop %v788
  %v790 = vmul.f32 %v769, 1.442695
  %v791 = vpow.pop %v790
  %v792 = vmul.f32 %v770, 1.442695
  %v793 = vpow.pop %v792
  %v794 = vmul.f32 %v771, 1.442695
  %v795 = vpow.pop %v794
  %v796 = vmul.f32 %v772, 1.442695
  %v797 = vpow.pop %v796
  %v798 = vmul.f32 %v773, 1.442695
  %v799 = vpow.pop %v798
  %v800 = vmul.f32 %v774, 1.442695
  %v801 = vpow.pop %v800
  %v802 = vmul.f32 %v775, 1.442695
  %v803 = vpow.pop %v802
  %v804 = vmul.f32 %v776, 1.442695
  %v805 = vpow.pop %v804
  %v806 = vmul.f32 %v777, 1.442695
  %v807 = vpow.pop %v806
  %v808 = vmul.f32 %v778, 1.442695
  %v809 = vpow.pop %v808
  %v810 = vmul.f32 %v779, 1.442695
  %v811 = vpow.pop %v810
  %v812 = vmul.f32 %v748, %v781
  %v813 = vmul.f32 %v749, %v783
  %v814 = vmul.f32 %v750, %v785
  %v815 = vmul.f32 %v751, %v787
  %v816 = vmul.f32 %v752, %v789
  %v817 = vmul.f32 %v753, %v791
  %v818 = vmul.f32 %v754, %v793
  %v819 = vmul.f32 %v755, %v795
  %v820 = vmul.f32 %v756, %v797
  %v821 = vmul.f32 %v757, %v799
  %v822 = vmul.f32 %v758, %v801
  %v823 = vmul.f32 %v759, %v803
  %v824 = vmul.f32 %v760, %v805
  %v825 = vmul.f32 %v761, %v807
  %v826 = vmul.f32 %v762, %v809
  %v827 = vmul.f32 %v763, %v811
  %829 = vset.pattern.permute.xlu0 0
  %830 = vperm.xlu0 %829, %v732
  %v831 = vpop.permute.xlu0 %830
  %834 = vset.pattern.permute.xlu0 0
  %835 = vperm.xlu0 %834, %v733
  %v836 = vpop.permute.xlu0 %835
  %839 = vset.pattern.permute.xlu0 0
  %840 = vperm.xlu0 %839, %v734
  %v841 = vpop.permute.xlu0 %840
  %844 = vset.pattern.permute.xlu0 0
  %845 = vperm.xlu0 %844, %v735
  %v846 = vpop.permute.xlu0 %845
  %849 = vset.pattern.permute.xlu0 0
  %850 = vperm.xlu0 %849, %v736
  %v851 = vpop.permute.xlu0 %850
  %854 = vset.pattern.permute.xlu0 0
  %855 = vperm.xlu0 %854, %v737
  %v856 = vpop.permute.xlu0 %855
  %859 = vset.pattern.permute.xlu0 0
  %860 = vperm.xlu0 %859, %v738
  %v861 = vpop.permute.xlu0 %860
  %864 = vset.pattern.permute.xlu0 0
  %865 = vperm.xlu0 %864, %v739
  %v866 = vpop.permute.xlu0 %865
  %869 = vset.pattern.permute.xlu0 0
  %870 = vperm.xlu0 %869, %v740
  %v871 = vpop.permute.xlu0 %870
  %874 = vset.pattern.permute.xlu0 0
  %875 = vperm.xlu0 %874, %v741
  %v876 = vpop.permute.xlu0 %875
  %879 = vset.pattern.permute.xlu0 0
  %880 = vperm.xlu0 %879, %v742
  %v881 = vpop.permute.xlu0 %880
  %884 = vset.pattern.permute.xlu0 0
  %885 = vperm.xlu0 %884, %v743
  %v886 = vpop.permute.xlu0 %885
  %889 = vset.pattern.permute.xlu0 0
  %890 = vperm.xlu0 %889, %v744
  %v891 = vpop.permute.xlu0 %890
  %894 = vset.pattern.permute.xlu0 0
  %895 = vperm.xlu0 %894, %v745
  %v896 = vpop.permute.xlu0 %895
  %899 = vset.pattern.permute.xlu0 0
  %900 = vperm.xlu0 %899, %v746
  %v901 = vpop.permute.xlu0 %900
  %904 = vset.pattern.permute.xlu0 0
  %905 = vperm.xlu0 %904, %v747
  %v906 = vpop.permute.xlu0 %905
  %v908 = vsub.f32 %v344, %v831
  %v909 = vsub.f32 %v346, %v831
  %v910 = vsub.f32 %v348, %v836
  %v911 = vsub.f32 %v350, %v836
  %v912 = vsub.f32 %v354, %v841
  %v913 = vsub.f32 %v356, %v841
  %v914 = vsub.f32 %v358, %v846
  %v915 = vsub.f32 %v360, %v846
  %v916 = vsub.f32 %v364, %v851
  %v917 = vsub.f32 %v366, %v851
  %v918 = vsub.f32 %v368, %v856
  %v919 = vsub.f32 %v370, %v856
  %v920 = vsub.f32 %v374, %v861
  %v921 = vsub.f32 %v376, %v861
  %v922 = vsub.f32 %v378, %v866
  %v923 = vsub.f32 %v380, %v866
  %v924 = vsub.f32 %v384, %v871
  %v925 = vsub.f32 %v386, %v871
  %v926 = vsub.f32 %v388, %v876
  %v927 = vsub.f32 %v390, %v876
  %v928 = vsub.f32 %v394, %v881
  %v929 = vsub.f32 %v396, %v881
  %v930 = vsub.f32 %v398, %v886
  %v931 = vsub.f32 %v400, %v886
  %v932 = vsub.f32 %v404, %v891
  %v933 = vsub.f32 %v406, %v891
  %v934 = vsub.f32 %v408, %v896
  %v935 = vsub.f32 %v410, %v896
  %v936 = vsub.f32 %v414, %v901
  %v937 = vsub.f32 %v416, %v901
  %v938 = vsub.f32 %v418, %v906
  %v939 = vsub.f32 %v420, %v906
  %v940 = vmul.f32 %v908, 1.442695
  %v941 = vpow.pop %v940
  %v942 = vmul.f32 %v909, 1.442695
  %v943 = vpow.pop %v942
  %v944 = vmul.f32 %v910, 1.442695
  %v945 = vpow.pop %v944
  %v946 = vmul.f32 %v911, 1.442695
  %v947 = vpow.pop %v946
  %v948 = vmul.f32 %v912, 1.442695
  %v949 = vpow.pop %v948
  %v950 = vmul.f32 %v913, 1.442695
  %v951 = vpow.pop %v950
  %v952 = vmul.f32 %v914, 1.442695
  %v953 = vpow.pop %v952
  %v954 = vmul.f32 %v915, 1.442695
  %v955 = vpow.pop %v954
  %v956 = vmul.f32 %v916, 1.442695
  %v957 = vpow.pop %v956
  %v958 = vmul.f32 %v917, 1.442695
  %v959 = vpow.pop %v958
  %v960 = vmul.f32 %v918, 1.442695
  %v961 = vpow.pop %v960
  %v962 = vmul.f32 %v919, 1.442695
  %v963 = vpow.pop %v962
  %v964 = vmul.f32 %v920, 1.442695
  %v965 = vpow.pop %v964
  %v966 = vmul.f32 %v921, 1.442695
  %v967 = vpow.pop %v966
  %v968 = vmul.f32 %v922, 1.442695
  %v969 = vpow.pop %v968
  %v970 = vmul.f32 %v923, 1.442695
  %v971 = vpow.pop %v970
  %v972 = vmul.f32 %v924, 1.442695
  %v973 = vpow.pop %v972
  %v974 = vmul.f32 %v925, 1.442695
  %v975 = vpow.pop %v974
  %v976 = vmul.f32 %v926, 1.442695
  %v977 = vpow.pop %v976
  %v978 = vmul.f32 %v927, 1.442695
  %v979 = vpow.pop %v978
  %v980 = vmul.f32 %v928, 1.442695
  %v981 = vpow.pop %v980
  %v982 = vmul.f32 %v929, 1.442695
  %v983 = vpow.pop %v982
  %v984 = vmul.f32 %v930, 1.442695
  %v985 = vpow.pop %v984
  %v986 = vmul.f32 %v931, 1.442695
  %v987 = vpow.pop %v986
  %v988 = vmul.f32 %v932, 1.442695
  %v989 = vpow.pop %v988
  %v990 = vmul.f32 %v933, 1.442695
  %v991 = vpow.pop %v990
  %v992 = vmul.f32 %v934, 1.442695
  %v993 = vpow.pop %v992
  %v994 = vmul.f32 %v935, 1.442695
  %v995 = vpow.pop %v994
  %v996 = vmul.f32 %v936, 1.442695
  %v997 = vpow.pop %v996
  %v998 = vmul.f32 %v937, 1.442695
  %v999 = vpow.pop %v998
  %v1000 = vmul.f32 %v938, 1.442695
  %v1001 = vpow.pop %v1000
  %v1002 = vmul.f32 %v939, 1.442695
  %v1003 = vpow.pop %v1002
  %v1004 = vadd.f32 %v941, %v943
  %1005 = vadd.xlane.f32.xlu0 %v1004
  %v1006 = vpop.xlane.xlu0 %1005
  %v1007 = vadd.f32 %v945, %v947
  %1008 = vadd.xlane.f32.xlu0 %v1007
  %v1009 = vpop.xlane.xlu0 %1008
  %v1010 = vadd.f32 %v949, %v951
  %1011 = vadd.xlane.f32.xlu0 %v1010
  %v1012 = vpop.xlane.xlu0 %1011
  %v1013 = vadd.f32 %v953, %v955
  %1014 = vadd.xlane.f32.xlu0 %v1013
  %v1015 = vpop.xlane.xlu0 %1014
  %v1016 = vadd.f32 %v957, %v959
  %1017 = vadd.xlane.f32.xlu0 %v1016
  %v1018 = vpop.xlane.xlu0 %1017
  %v1019 = vadd.f32 %v961, %v963
  %1020 = vadd.xlane.f32.xlu0 %v1019
  %v1021 = vpop.xlane.xlu0 %1020
  %v1022 = vadd.f32 %v965, %v967
  %1023 = vadd.xlane.f32.xlu0 %v1022
  %v1024 = vpop.xlane.xlu0 %1023
  %v1025 = vadd.f32 %v969, %v971
  %1026 = vadd.xlane.f32.xlu0 %v1025
  %v1027 = vpop.xlane.xlu0 %1026
  %v1028 = vadd.f32 %v973, %v975
  %1029 = vadd.xlane.f32.xlu0 %v1028
  %v1030 = vpop.xlane.xlu0 %1029
  %v1031 = vadd.f32 %v977, %v979
  %1032 = vadd.xlane.f32.xlu0 %v1031
  %v1033 = vpop.xlane.xlu0 %1032
  %v1034 = vadd.f32 %v981, %v983
  %1035 = vadd.xlane.f32.xlu0 %v1034
  %v1036 = vpop.xlane.xlu0 %1035
  %v1037 = vadd.f32 %v985, %v987
  %1038 = vadd.xlane.f32.xlu0 %v1037
  %v1039 = vpop.xlane.xlu0 %1038
  %v1040 = vadd.f32 %v989, %v991
  %1041 = vadd.xlane.f32.xlu0 %v1040
  %v1042 = vpop.xlane.xlu0 %1041
  %v1043 = vadd.f32 %v993, %v995
  %1044 = vadd.xlane.f32.xlu0 %v1043
  %v1045 = vpop.xlane.xlu0 %1044
  %v1046 = vadd.f32 %v997, %v999
  %1047 = vadd.xlane.f32.xlu0 %v1046
  %v1048 = vpop.xlane.xlu0 %1047
  %v1049 = vadd.f32 %v1001, %v1003
  %1050 = vadd.xlane.f32.xlu0 %v1049
  %v1051 = vpop.xlane.xlu0 %1050
  %v1052 = vadd.f32 %v812, %v1006
  %v1053 = vadd.f32 %v813, %v1009
  %v1054 = vadd.f32 %v814, %v1012
  %v1055 = vadd.f32 %v815, %v1015
  %v1056 = vadd.f32 %v816, %v1018
  %v1057 = vadd.f32 %v817, %v1021
  %v1058 = vadd.f32 %v818, %v1024
  %v1059 = vadd.f32 %v819, %v1027
  %v1060 = vadd.f32 %v820, %v1030
  %v1061 = vadd.f32 %v821, %v1033
  %v1062 = vadd.f32 %v822, %v1036
  %v1063 = vadd.f32 %v823, %v1039
  %v1064 = vadd.f32 %v824, %v1042
  %v1065 = vadd.f32 %v825, %v1045
  %v1066 = vadd.f32 %v826, %v1048
  %v1067 = vadd.f32 %v827, %v1051
  %1068 = vst.msk [vmem:[#allocation3] sm:$0xff] %vm651, %v1052
  %1069 = vst.msk [vmem:[#allocation3 + $0x8] sm:$0xff] %vm651, %v1053
  %1070 = vst.msk [vmem:[#allocation3 + $0x10] sm:$0xff] %vm651, %v1054
  %1071 = vst.msk [vmem:[#allocation3 + $0x18] sm:$0xff] %vm651, %v1055
  %1072 = vst.msk [vmem:[#allocation3 + $0x20] sm:$0xff] %vm651, %v1056
  %1073 = vst.msk [vmem:[#allocation3 + $0x28] sm:$0xff] %vm651, %v1057
  %1074 = vst.msk [vmem:[#allocation3 + $0x30] sm:$0xff] %vm651, %v1058
  %1075 = vst.msk [vmem:[#allocation3 + $0x38] sm:$0xff] %vm651, %v1059
  %1076 = vst.msk [vmem:[#allocation3 + $0x40] sm:$0xff] %vm651, %v1060
  %1077 = vst.msk [vmem:[#allocation3 + $0x48] sm:$0xff] %vm651, %v1061
  %1078 = vst.msk [vmem:[#allocation3 + $0x50] sm:$0xff] %vm651, %v1062
  %1079 = vst.msk [vmem:[#allocation3 + $0x58] sm:$0xff] %vm651, %v1063
  %1080 = vst.msk [vmem:[#allocation3 + $0x60] sm:$0xff] %vm651, %v1064
  %1081 = vst.msk [vmem:[#allocation3 + $0x68] sm:$0xff] %vm651, %v1065
  %1082 = vst.msk [vmem:[#allocation3 + $0x70] sm:$0xff] %vm651, %v1066
  %1083 = vst.msk [vmem:[#allocation3 + $0x78] sm:$0xff] %vm651, %v1067
  %1084 = vst.msk [vmem:[#allocation2] sm:$0xff] %vm651, %v732
  %1085 = vst.msk [vmem:[#allocation2 + $0x8] sm:$0xff] %vm651, %v733
  %1086 = vst.msk [vmem:[#allocation2 + $0x10] sm:$0xff] %vm651, %v734
  %1087 = vst.msk [vmem:[#allocation2 + $0x18] sm:$0xff] %vm651, %v735
  %1088 = vst.msk [vmem:[#allocation2 + $0x20] sm:$0xff] %vm651, %v736
  %1089 = vst.msk [vmem:[#allocation2 + $0x28] sm:$0xff] %vm651, %v737
  %1090 = vst.msk [vmem:[#allocation2 + $0x30] sm:$0xff] %vm651, %v738
  %1091 = vst.msk [vmem:[#allocation2 + $0x38] sm:$0xff] %vm651, %v739
  %1092 = vst.msk [vmem:[#allocation2 + $0x40] sm:$0xff] %vm651, %v740
  %1093 = vst.msk [vmem:[#allocation2 + $0x48] sm:$0xff] %vm651, %v741
  %1094 = vst.msk [vmem:[#allocation2 + $0x50] sm:$0xff] %vm651, %v742
  %1095 = vst.msk [vmem:[#allocation2 + $0x58] sm:$0xff] %vm651, %v743
  %1096 = vst.msk [vmem:[#allocation2 + $0x60] sm:$0xff] %vm651, %v744
  %1097 = vst.msk [vmem:[#allocation2 + $0x68] sm:$0xff] %vm651, %v745
  %1098 = vst.msk [vmem:[#allocation2 + $0x70] sm:$0xff] %vm651, %v746
  %1099 = vst.msk [vmem:[#allocation2 + $0x78] sm:$0xff] %vm651, %v747
  // Predicated region
  $region18: #{liger_lm_head_ce.1} parent=0 // pred_check
    %p1100 = pneg %p15
  $region19: #{liger_lm_head_ce.1} parent=0 // pred_check_branch
    %1102 = sbr.rel (%p1100) target = $region21
  $region20: #{liger_lm_head_ce.1} parent=0 // pred_region
    %vm1103 = vcmp.ne.s32.totalorder %v422, 4294967196
    %vm1104 = vcmp.ne.s32.totalorder %v423, 4294967196
    %vm1105 = vcmp.ne.s32.totalorder %v424, 4294967196
    %vm1106 = vcmp.ne.s32.totalorder %v425, 4294967196
    %vm1107 = vcmp.ne.s32.totalorder %v426, 4294967196
    %vm1108 = vcmp.ne.s32.totalorder %v427, 4294967196
    %vm1109 = vcmp.ne.s32.totalorder %v428, 4294967196
    %vm1110 = vcmp.ne.s32.totalorder %v429, 4294967196
    %vm1111 = vcmp.ne.s32.totalorder %v430, 4294967196
    %vm1112 = vcmp.ne.s32.totalorder %v431, 4294967196
    %vm1113 = vcmp.ne.s32.totalorder %v432, 4294967196
    %vm1114 = vcmp.ne.s32.totalorder %v433, 4294967196
    %vm1115 = vcmp.ne.s32.totalorder %v434, 4294967196
    %vm1116 = vcmp.ne.s32.totalorder %v435, 4294967196
    %vm1117 = vcmp.ne.s32.totalorder %v436, 4294967196
    %vm1118 = vcmp.ne.s32.totalorder %v437, 4294967196
    %v1119 = vld [vmem:[#allocation2] sm:$0xff]
    %v1120 = vld [vmem:[#allocation2 + $0x8] sm:$0xff]
    %v1121 = vld [vmem:[#allocation2 + $0x10] sm:$0xff]
    %v1122 = vld [vmem:[#allocation2 + $0x18] sm:$0xff]
    %v1123 = vld [vmem:[#allocation2 + $0x20] sm:$0xff]
    %v1124 = vld [vmem:[#allocation2 + $0x28] sm:$0xff]
    %v1125 = vld [vmem:[#allocation2 + $0x30] sm:$0xff]
    %v1126 = vld [vmem:[#allocation2 + $0x38] sm:$0xff]
    %v1127 = vld [vmem:[#allocation2 + $0x40] sm:$0xff]
    %v1128 = vld [vmem:[#allocation2 + $0x48] sm:$0xff]
    %v1129 = vld [vmem:[#allocation2 + $0x50] sm:$0xff]
    %v1130 = vld [vmem:[#allocation2 + $0x58] sm:$0xff]
    %v1131 = vld [vmem:[#allocation2 + $0x60] sm:$0xff]
    %v1132 = vld [vmem:[#allocation2 + $0x68] sm:$0xff]
    %v1133 = vld [vmem:[#allocation2 + $0x70] sm:$0xff]
    %v1134 = vld [vmem:[#allocation2 + $0x78] sm:$0xff]
    %v1135 = vld [vmem:[#allocation3] sm:$0xff]
    %v1136 = vld [vmem:[#allocation3 + $0x8] sm:$0xff]
    %v1137 = vld [vmem:[#allocation3 + $0x10] sm:$0xff]
    %v1138 = vld [vmem:[#allocation3 + $0x18] sm:$0xff]
    %v1139 = vld [vmem:[#allocation3 + $0x20] sm:$0xff]
    %v1140 = vld [vmem:[#allocation3 + $0x28] sm:$0xff]
    %v1141 = vld [vmem:[#allocation3 + $0x30] sm:$0xff]
    %v1142 = vld [vmem:[#allocation3 + $0x38] sm:$0xff]
    %v1143 = vld [vmem:[#allocation3 + $0x40] sm:$0xff]
    %v1144 = vld [vmem:[#allocation3 + $0x48] sm:$0xff]
    %v1145 = vld [vmem:[#allocation3 + $0x50] sm:$0xff]
    %v1146 = vld [vmem:[#allocation3 + $0x58] sm:$0xff]
    %v1147 = vld [vmem:[#allocation3 + $0x60] sm:$0xff]
    %v1148 = vld [vmem:[#allocation3 + $0x68] sm:$0xff]
    %v1149 = vld [vmem:[#allocation3 + $0x70] sm:$0xff]
    %v1150 = vld [vmem:[#allocation3 + $0x78] sm:$0xff]
    %v1151 = vlog2.pop %v1135
    %v1152 = vmul.f32 %v1151, 0.6931472
    %v1153 = vlog2.pop %v1136
    %v1154 = vmul.f32 %v1153, 0.6931472
    %v1155 = vlog2.pop %v1137
    %v1156 = vmul.f32 %v1155, 0.6931472
    %v1157 = vlog2.pop %v1138
    %v1158 = vmul.f32 %v1157, 0.6931472
    %v1159 = vlog2.pop %v1139
    %v1160 = vmul.f32 %v1159, 0.6931472
    %v1161 = vlog2.pop %v1140
    %v1162 = vmul.f32 %v1161, 0.6931472
    %v1163 = vlog2.pop %v1141
    %v1164 = vmul.f32 %v1163, 0.6931472
    %v1165 = vlog2.pop %v1142
    %v1166 = vmul.f32 %v1165, 0.6931472
    %v1167 = vlog2.pop %v1143
    %v1168 = vmul.f32 %v1167, 0.6931472
    %v1169 = vlog2.pop %v1144
    %v1170 = vmul.f32 %v1169, 0.6931472
    %v1171 = vlog2.pop %v1145
    %v1172 = vmul.f32 %v1171, 0.6931472
    %v1173 = vlog2.pop %v1146
    %v1174 = vmul.f32 %v1173, 0.6931472
    %v1175 = vlog2.pop %v1147
    %v1176 = vmul.f32 %v1175, 0.6931472
    %v1177 = vlog2.pop %v1148
    %v1178 = vmul.f32 %v1177, 0.6931472
    %v1179 = vlog2.pop %v1149
    %v1180 = vmul.f32 %v1179, 0.6931472
    %v1181 = vlog2.pop %v1150
    %v1182 = vmul.f32 %v1181, 0.6931472
    %v1183 = vadd.f32 %v1119, %v1152
    %v1184 = vadd.f32 %v1120, %v1154
    %v1185 = vadd.f32 %v1121, %v1156
    %v1186 = vadd.f32 %v1122, %v1158
    %v1187 = vadd.f32 %v1123, %v1160
    %v1188 = vadd.f32 %v1124, %v1162
    %v1189 = vadd.f32 %v1125, %v1164
    %v1190 = vadd.f32 %v1126, %v1166
    %v1191 = vadd.f32 %v1127, %v1168
    %v1192 = vadd.f32 %v1128, %v1170
    %v1193 = vadd.f32 %v1129, %v1172
    %v1194 = vadd.f32 %v1130, %v1174
    %v1195 = vadd.f32 %v1131, %v1176
    %v1196 = vadd.f32 %v1132, %v1178
    %v1197 = vadd.f32 %v1133, %v1180
    %v1198 = vadd.f32 %v1134, %v1182
    %v1199 = vld [vmem:[#allocation4] sm:$0xff]
    %v1200 = vld [vmem:[#allocation4 + $0x8] sm:$0xff]
    %v1201 = vld [vmem:[#allocation4 + $0x10] sm:$0xff]
    %v1202 = vld [vmem:[#allocation4 + $0x18] sm:$0xff]
    %v1203 = vld [vmem:[#allocation4 + $0x20] sm:$0xff]
    %v1204 = vld [vmem:[#allocation4 + $0x28] sm:$0xff]
    %v1205 = vld [vmem:[#allocation4 + $0x30] sm:$0xff]
    %v1206 = vld [vmem:[#allocation4 + $0x38] sm:$0xff]
    %v1207 = vld [vmem:[#allocation4 + $0x40] sm:$0xff]
    %v1208 = vld [vmem:[#allocation4 + $0x48] sm:$0xff]
    %v1209 = vld [vmem:[#allocation4 + $0x50] sm:$0xff]
    %v1210 = vld [vmem:[#allocation4 + $0x58] sm:$0xff]
    %v1211 = vld [vmem:[#allocation4 + $0x60] sm:$0xff]
    %v1212 = vld [vmem:[#allocation4 + $0x68] sm:$0xff]
    %v1213 = vld [vmem:[#allocation4 + $0x70] sm:$0xff]
    %v1214 = vld [vmem:[#allocation4 + $0x78] sm:$0xff]
    %v1215 = vsub.f32 %v1183, %v1199
    %v1216 = vsub.f32 %v1184, %v1200
    %v1217 = vsub.f32 %v1185, %v1201
    %v1218 = vsub.f32 %v1186, %v1202
    %v1219 = vsub.f32 %v1187, %v1203
    %v1220 = vsub.f32 %v1188, %v1204
    %v1221 = vsub.f32 %v1189, %v1205
    %v1222 = vsub.f32 %v1190, %v1206
    %v1223 = vsub.f32 %v1191, %v1207
    %v1224 = vsub.f32 %v1192, %v1208
    %v1225 = vsub.f32 %v1193, %v1209
    %v1226 = vsub.f32 %v1194, %v1210
    %v1227 = vsub.f32 %v1195, %v1211
    %v1228 = vsub.f32 %v1196, %v1212
    %v1229 = vsub.f32 %v1197, %v1213
    %v1230 = vsub.f32 %v1198, %v1214
    %v1231 = vsel %vm1103, %v1215, 0.0
    %v1232 = vsel %vm1104, %v1216, 0.0
    %v1233 = vsel %vm1105, %v1217, 0.0
    %v1234 = vsel %vm1106, %v1218, 0.0
    %v1235 = vsel %vm1107, %v1219, 0.0
    %v1236 = vsel %vm1108, %v1220, 0.0
    %v1237 = vsel %vm1109, %v1221, 0.0
    %v1238 = vsel %vm1110, %v1222, 0.0
    %v1239 = vsel %vm1111, %v1223, 0.0
    %v1240 = vsel %vm1112, %v1224, 0.0
    %v1241 = vsel %vm1113, %v1225, 0.0
    %v1242 = vsel %vm1114, %v1226, 0.0
    %v1243 = vsel %vm1115, %v1227, 0.0
    %v1244 = vsel %vm1116, %v1228, 0.0
    %v1245 = vsel %vm1117, %v1229, 0.0
    %v1246 = vsel %vm1118, %v1230, 0.0
    %v1247 = vsel %vm651, %v1231, 0.0
    %v1248 = vsel %vm651, %v1232, 0.0
    %v1249 = vadd.f32 %v1247, %v1248
    %v1250 = vsel %vm651, %v1233, 0.0
    %v1251 = vadd.f32 %v1249, %v1250
    %v1252 = vsel %vm651, %v1234, 0.0
    %v1253 = vadd.f32 %v1251, %v1252
    %v1254 = vsel %vm651, %v1235, 0.0
    %v1255 = vadd.f32 %v1253, %v1254
    %v1256 = vsel %vm651, %v1236, 0.0
    %v1257 = vadd.f32 %v1255, %v1256
    %v1258 = vsel %vm651, %v1237, 0.0
    %v1259 = vadd.f32 %v1257, %v1258
    %v1260 = vsel %vm651, %v1238, 0.0
    %v1261 = vadd.f32 %v1259, %v1260
    %v1262 = vsel %vm651, %v1239, 0.0
    %v1263 = vadd.f32 %v1261, %v1262
    %v1264 = vsel %vm651, %v1240, 0.0
    %v1265 = vadd.f32 %v1263, %v1264
    %v1266 = vsel %vm651, %v1241, 0.0
    %v1267 = vadd.f32 %v1265, %v1266
    %v1268 = vsel %vm651, %v1242, 0.0
    %v1269 = vadd.f32 %v1267, %v1268
    %v1270 = vsel %vm651, %v1243, 0.0
    %v1271 = vadd.f32 %v1269, %v1270
    %v1272 = vsel %vm651, %v1244, 0.0
    %v1273 = vadd.f32 %v1271, %v1272
    %v1274 = vsel %vm651, %v1245, 0.0
    %v1275 = vadd.f32 %v1273, %v1274
    %v1276 = vsel %vm651, %v1246, 0.0
    %v1277 = vadd.f32 %v1275, %v1276
    %1278 = vadd.xlane.f32.xlu0 %v1277
    %v1279 = vpop.xlane.xlu0 %1278
    %v1280 = vrot.slane %v1279, 4
    %v1281 = vadd.f32 %v1279, %v1280
    %v1282 = vrot.slane %v1281, 2
    %v1283 = vadd.f32 %v1281, %v1282
    %v1284 = vrot.slane %v1283, 1
    %v1285 = vadd.f32 %v1283, %v1284
    %s1286 = vtos %v1285
    %v1287 = vsel %vm1103, 1, 0
    %v1288 = vsel %vm1104, 1, 0
    %v1289 = vsel %vm1105, 1, 0
    %v1290 = vsel %vm1106, 1, 0
    %v1291 = vsel %vm1107, 1, 0
    %v1292 = vsel %vm1108, 1, 0
    %v1293 = vsel %vm1109, 1, 0
    %v1294 = vsel %vm1110, 1, 0
    %v1295 = vsel %vm1111, 1, 0
    %v1296 = vsel %vm1112, 1, 0
    %v1297 = vsel %vm1113, 1, 0
    %v1298 = vsel %vm1114, 1, 0
    %v1299 = vsel %vm1115, 1, 0
    %v1300 = vsel %vm1116, 1, 0
    %v1301 = vsel %vm1117, 1, 0
    %v1302 = vsel %vm1118, 1, 0
    %v1303 = vcvt.s32.f32 %v1287
    %v1304 = vcvt.s32.f32 %v1288
    %v1305 = vcvt.s32.f32 %v1289
    %v1306 = vcvt.s32.f32 %v1290
    %v1307 = vcvt.s32.f32 %v1291
    %v1308 = vcvt.s32.f32 %v1292
    %v1309 = vcvt.s32.f32 %v1293
    %v1310 = vcvt.s32.f32 %v1294
    %v1311 = vcvt.s32.f32 %v1295
    %v1312 = vcvt.s32.f32 %v1296
    %v1313 = vcvt.s32.f32 %v1297
    %v1314 = vcvt.s32.f32 %v1298
    %v1315 = vcvt.s32.f32 %v1299
    %v1316 = vcvt.s32.f32 %v1300
    %v1317 = vcvt.s32.f32 %v1301
    %v1318 = vcvt.s32.f32 %v1302
    %v1319 = vsel %vm651, %v1303, 0.0
    %v1320 = vsel %vm651, %v1304, 0.0
    %v1321 = vadd.f32 %v1319, %v1320
    %v1322 = vsel %vm651, %v1305, 0.0
    %v1323 = vadd.f32 %v1321, %v1322
    %v1324 = vsel %vm651, %v1306, 0.0
    %v1325 = vadd.f32 %v1323, %v1324
    %v1326 = vsel %vm651, %v1307, 0.0
    %v1327 = vadd.f32 %v1325, %v1326
    %v1328 = vsel %vm651, %v1308, 0.0
    %v1329 = vadd.f32 %v1327, %v1328
    %v1330 = vsel %vm651, %v1309, 0.0
    %v1331 = vadd.f32 %v1329, %v1330
    %v1332 = vsel %vm651, %v1310, 0.0
    %v1333 = vadd.f32 %v1331, %v1332
    %v1334 = vsel %vm651, %v1311, 0.0
    %v1335 = vadd.f32 %v1333, %v1334
    %v1336 = vsel %vm651, %v1312, 0.0
    %v1337 = vadd.f32 %v1335, %v1336
    %v1338 = vsel %vm651, %v1313, 0.0
    %v1339 = vadd.f32 %v1337, %v1338
    %v1340 = vsel %vm651, %v1314, 0.0
    %v1341 = vadd.f32 %v1339, %v1340
    %v1342 = vsel %vm651, %v1315, 0.0
    %v1343 = vadd.f32 %v1341, %v1342
    %v1344 = vsel %vm651, %v1316, 0.0
    %v1345 = vadd.f32 %v1343, %v1344
    %v1346 = vsel %vm651, %v1317, 0.0
    %v1347 = vadd.f32 %v1345, %v1346
    %v1348 = vsel %vm651, %v1318, 0.0
    %v1349 = vadd.f32 %v1347, %v1348
    %1350 = vadd.xlane.f32.xlu0 %v1349
    %v1351 = vpop.xlane.xlu0 %1350
    %v1352 = vrot.slane %v1351, 4
    %v1353 = vadd.f32 %v1351, %v1352
    %v1354 = vrot.slane %v1353, 2
    %v1355 = vadd.f32 %v1353, %v1354
    %v1356 = vrot.slane %v1355, 1
    %v1357 = vadd.f32 %v1355, %v1356
    %s1358 = vtos %v1357
    %vm1359 = vcmp.eq.s32.totalorder %v457, 0
    %vm1360 = vcmp.eq.s32.totalorder %v457, 1
    %v1361 = vstv %s1358
    %v1362 = vsel %vm1360, %v1361, 0.0
    %v1363 = vstv %s1286
    %v1364 = vsel %vm1359, %v1363, %v1362
    %1365 = vst [vmem:[%s3] sm:$0x1] %v1364
  $region21: #{liger_lm_head_ce.1} parent=0 // pred_fallthru
    _
  // Predicated region
  $region22: #{liger_lm_head_ce.1} parent=0 // pred_check
    _
  $region23: #{liger_lm_head_ce.1} parent=0 // pred_check_branch
    %1367 = sbr.rel (0) target = $region25
  $region24: #{liger_lm_head_ce.1} parent=0 // pred_region
    _
  $region25: #{liger_lm_head_ce.1} parent=0 // pred_fallthru
    _
  // Predicated region
  $region26: #{liger_lm_head_ce.1} parent=0 // pred_check
    _
  $region27: #{liger_lm_head_ce.1} parent=0 // pred_check_branch
    %1369 = sbr.rel (0) target = $region29
  $region28: #{liger_lm_head_ce.1} parent=0 // pred_region
    _
  $region29: #{liger_lm_head_ce.1} parent=0 // pred_fallthru
    _

</llo_original>
